<compile_context>
chip_gen: v7x
topology: tpu7x:2x2x1
jax: 0.10.0
libtpu: 0.0.40
codegen_flags: <defaults>
</compile_context>

<pallas_src>
import functools
import math

import numpy as np
import jax
import jax.numpy as jnp
from jax import lax
from jax.experimental import pallas as pl
from jax.experimental.pallas import tpu as pltpu

# ----------------------------------------------------------------------------
# Pallas plumbing
# ----------------------------------------------------------------------------
_VMEM_LIMIT = 32 * 1024 * 1024      # v7x-safe (64 MiB physical VMEM per TensorCore)
BLOCK_M = 512                       # matmul row tile (multiple of 8; ok on v5e/v6e/v7x)


def _cp(*sem):
    return pltpu.CompilerParams(dimension_semantics=sem,
                                vmem_limit_bytes=_VMEM_LIMIT)


def _sigmoid(x):
    return 1.0 / (1.0 + jnp.exp(-x))


# ----------------------------------------------------------------------------
# Gridded matmul + bias + activation (bf16 datapath, f32 accumulation)
# ----------------------------------------------------------------------------
def _mm_kernel(a_ref, b_ref, bias_ref, o_ref, *, act):
    acc = jnp.dot(a_ref[...], b_ref[...], preferred_element_type=jnp.float32)
    acc = acc + bias_ref[...]
    if act == "silu":
        acc = acc * _sigmoid(acc)
    elif act == "sigmoid":
        acc = _sigmoid(acc)
    o_ref[...] = acc.astype(o_ref.dtype)


@functools.partial(jax.jit, static_argnames=("act", "out_dtype"))
def matmul_bias(a, b, bias, act="none", out_dtype=jnp.bfloat16):
    """a:[M,K] @ b:[K,N] + bias:[N], fused activation.  Gridded over M row tiles."""
    M, K = a.shape
    N = b.shape[1]
    bm = M if M <= BLOCK_M else BLOCK_M
    return pl.pallas_call(
        functools.partial(_mm_kernel, act=act),
        out_shape=jax.ShapeDtypeStruct((M, N), out_dtype),
        grid=(pl.cdiv(M, bm),),
        in_specs=[
            pl.BlockSpec((bm, K), lambda i: (i, 0)),
            pl.BlockSpec((K, N), lambda i: (0, 0)),
            pl.BlockSpec((1, N), lambda i: (0, 0)),
        ],
        out_specs=pl.BlockSpec((bm, N), lambda i: (i, 0)),
        compiler_params=_cp("parallel"),
    )(a, b, bias.reshape(1, N))


@functools.partial(jax.jit, static_argnames=("stride", "act"))
def conv2d(x, w, bias, stride=1, act="silu"):
    """x:[B,H,W,Cin] NHWC bf16, w:[kh,kw,Cin,Cout] bf16.
    1x1 -> direct gridded matmul.  kxk is only used for the tiny 3x3/Cin=3 stem
    (im2col glue is cheap there: K=27)."""
    B, H, W, Cin = x.shape
    kh, kw, _, Cout = w.shape
    if kh == 1 and kw == 1 and stride == 1:
        out = matmul_bias(x.reshape(B * H * W, Cin), w.reshape(Cin, Cout), bias, act)
        return out.reshape(B, H, W, Cout)
    p = (kh - 1) // 2
    Ho = (H + 2 * p - kh) // stride + 1
    Wo = (W + 2 * p - kw) // stride + 1
    xp = jnp.pad(x, ((0, 0), (p, p), (p, p), (0, 0)))
    taps = []
    for i in range(kh):
        for j in range(kw):
            taps.append(xp[:, i:i + (Ho - 1) * stride + 1:stride,
                              j:j + (Wo - 1) * stride + 1:stride, :])
    pat = jnp.stack(taps, axis=3).reshape(B * Ho * Wo, kh * kw * Cin)
    out = matmul_bias(pat, w.reshape(kh * kw * Cin, Cout), bias, act)
    return out.reshape(B, Ho, Wo, Cout)


# ----------------------------------------------------------------------------
# Depthwise conv + folded-BN bias + SiLU  (taps gathered in-kernel, no HBM im2col)
# ----------------------------------------------------------------------------
def _dw_kernel(*refs, k, s, Ho, Wo):
    nph = s * s
    phase_refs = refs[:nph]
    w_ref, b_ref, o_ref = refs[nph], refs[nph + 1], refs[nph + 2]
    C = o_ref.shape[-1]
    acc = jnp.zeros((Ho, Wo, C), jnp.float32)
    for i in range(k):
        for j in range(k):
            ph = phase_refs[(i % s) * s + (j % s)]
            tap = ph[0, pl.ds(i // s, Ho), pl.ds(j // s, Wo), :].astype(jnp.float32)
            acc = acc + tap * w_ref[i * k + j].astype(jnp.float32)
    acc = acc + b_ref[...]
    acc = acc * _sigmoid(acc)
    o_ref[0] = acc.astype(o_ref.dtype)


@functools.partial(jax.jit, static_argnames=("stride",))
def depthwise_conv_silu(x, w, bias, stride):
    """x:[B,H,W,C] bf16, w:[k*k,1,C] bf16, bias:[1,1,C] f32.
    Stride handled by splitting the padded input into s*s contiguous phases in the
    wrapper so all in-kernel reads are plain (unstrided) ds slices."""
    B, H, W, C = x.shape
    k2 = w.shape[0]
    k = int(round(math.sqrt(k2)))
    s = stride
    p = (k - 1) // 2
    Ho = (H + 2 * p - k) // s + 1
    Wo = (W + 2 * p - k) // s + 1
    ext = (k - 1) // s                       # per-phase tap reach
    PH, PW = Ho + ext, Wo + ext
    pad_h = s * PH - H - p
    pad_w = s * PW - W - p
    xp = jnp.pad(x, ((0, 0), (p, pad_h), (p, pad_w), (0, 0)))
    if s == 1:
        phases = [xp]
    else:
        phases = [xp[:, i0::s, j0::s, :] for i0 in range(s) for j0 in range(s)]
    in_specs = ([pl.BlockSpec((1, PH, PW, C), lambda b: (b, 0, 0, 0))] * len(phases)
                + [pl.BlockSpec((k2, 1, C), lambda b: (0, 0, 0)),
                   pl.BlockSpec((1, 1, C), lambda b: (0, 0, 0))])
    return pl.pallas_call(
        functools.partial(_dw_kernel, k=k, s=s, Ho=Ho, Wo=Wo),
        out_shape=jax.ShapeDtypeStruct((B, Ho, Wo, C), jnp.bfloat16),
        grid=(B,),
        in_specs=in_specs,
        out_specs=pl.BlockSpec((1, Ho, Wo, C), lambda b: (b, 0, 0, 0)),
        compiler_params=_cp("parallel"),
    )(*phases, w, bias)


# ----------------------------------------------------------------------------
# Fused Squeeze-Excitation: avgpool + FC1(SiLU) + FC2(sigmoid)
# ----------------------------------------------------------------------------
def _se_kernel(h_ref, w1_ref, b1_ref, w2_ref, b2_ref, o_ref, acc_ref, *, hw, bm):
    t = pl.program_id(1)

    @pl.when(t == 0)
    def _():
        acc_ref[...] = jnp.zeros_like(acc_ref)

    rows = lax.broadcasted_iota(jnp.int32, (bm, 1), 0) + t * bm
    hv = jnp.where(rows < hw, h_ref[0].astype(jnp.float32), 0.0)
    acc_ref[...] += jnp.sum(hv, axis=0, keepdims=True)

    @pl.when(t == pl.num_programs(1) - 1)
    def _():
        pooled = acc_ref[...] * (1.0 / hw)
        z = jnp.dot(pooled.astype(jnp.bfloat16), w1_ref[...],
                    preferred_element_type=jnp.float32) + b1_ref[...]
        z = z * _sigmoid(z)
        z = jnp.dot(z.astype(jnp.bfloat16), w2_ref[...],
                    preferred_element_type=jnp.float32) + b2_ref[...]
        o_ref[...] = _sigmoid(z)


@jax.jit
def fused_se(h, w1, b1, w2, b2):
    """h:[B,HW,C] bf16 -> SE gate [B,C] f32."""
    B, HW, C = h.shape
    Csq = w1.shape[1]
    bm = HW if HW <= BLOCK_M else BLOCK_M
    return pl.pallas_call(
        functools.partial(_se_kernel, hw=HW, bm=bm),
        out_shape=jax.ShapeDtypeStruct((B, C), jnp.float32),
        grid=(B, pl.cdiv(HW, bm)),
        in_specs=[
            pl.BlockSpec((1, bm, C), lambda b, t: (b, t, 0)),
            pl.BlockSpec((C, Csq), lambda b, t: (0, 0)),
            pl.BlockSpec((1, Csq), lambda b, t: (0, 0)),
            pl.BlockSpec((Csq, C), lambda b, t: (0, 0)),
            pl.BlockSpec((1, C), lambda b, t: (0, 0)),
        ],
        out_specs=pl.BlockSpec((1, C), lambda b, t: (b, 0)),
        scratch_shapes=[pltpu.VMEM((1, C), jnp.float32)],
        compiler_params=_cp("parallel", "arbitrary"),
    )(h, w1, b1, w2, b2)


# ----------------------------------------------------------------------------
# Fused MBConv tail: SE-scale * x -> 1x1 project conv -> +bias (-> +residual)
# ----------------------------------------------------------------------------
def _proj_kernel(h_ref, s_ref, w_ref, bias_ref, *rest, has_res):
    if has_res:
        res_ref, o_ref = rest
    else:
        (o_ref,) = rest
    hv = h_ref[0].astype(jnp.float32) * s_ref[0]
    acc = jnp.dot(hv.astype(jnp.bfloat16), w_ref[...],
                  preferred_element_type=jnp.float32)
    acc = acc + bias_ref[...]
    if has_res:
        acc = acc + res_ref[0].astype(jnp.float32)
    o_ref[0] = acc.astype(o_ref.dtype)


@jax.jit
def fused_se_project(h, se, w, bias, res=None):
    """out[b,m,:] = (h[b,m,:] * se[b,:]) @ w + bias (+ res[b,m,:]).  h:[B,HW,Cin] bf16."""
    B, HW, Cin = h.shape
    Cout = w.shape[1]
    has_res = res is not None
    bm = HW if HW <= BLOCK_M else BLOCK_M
    in_specs = [
        pl.BlockSpec((1, bm, Cin), lambda b, m: (b, m, 0)),
        pl.BlockSpec((1, 1, Cin), lambda b, m: (b, 0, 0)),
        pl.BlockSpec((Cin, Cout), lambda b, m: (0, 0)),
        pl.BlockSpec((1, Cout), lambda b, m: (0, 0)),
    ]
    args = [h, se.reshape(B, 1, Cin), w, bias.reshape(1, Cout)]
    if has_res:
        in_specs.append(pl.BlockSpec((1, bm, Cout), lambda b, m: (b, m, 0)))
        args.append(res)
    return pl.pallas_call(
        functools.partial(_proj_kernel, has_res=has_res),
        out_shape=jax.ShapeDtypeStruct((B, HW, Cout), jnp.bfloat16),
        grid=(B, pl.cdiv(HW, bm)),
        in_specs=in_specs,
        out_specs=pl.BlockSpec((1, bm, Cout), lambda b, m: (b, m, 0)),
        compiler_params=_cp("parallel", "parallel"),
    )(*args)


# ----------------------------------------------------------------------------
# Fused network head: 1x1 conv(352->1408)+SiLU -> global avgpool -> classifier FC
# ----------------------------------------------------------------------------
def _head_kernel(x_ref, wh_ref, bh_ref, wf_ref, bf_ref, o_ref, acc_ref, *, hw, bm):
    t = pl.program_id(1)

    @pl.when(t == 0)
    def _():
        acc_ref[...] = jnp.zeros_like(acc_ref)

    z = jnp.dot(x_ref[0], wh_ref[...], preferred_element_type=jnp.float32) + bh_ref[...]
    z = z * _sigmoid(z)
    rows = lax.broadcasted_iota(jnp.int32, (bm, 1), 0) + t * bm
    z = jnp.where(rows < hw, z, 0.0)
    acc_ref[...] += jnp.sum(z, axis=0, keepdims=True)

    @pl.when(t == pl.num_programs(1) - 1)
    def _():
        pooled = acc_ref[...] * (1.0 / hw)
        logits = jnp.dot(pooled.astype(jnp.bfloat16), wf_ref[...],
                         preferred_element_type=jnp.float32) + bf_ref[...]
        o_ref[...] = logits


@jax.jit
def fused_head(x, wh, bh, wf, bf):
    """x:[B,HW,Cin] bf16 -> logits [B,num_classes] f32.  Dropout(p=0.3) is identity (eval)."""
    B, HW, Cin = x.shape
    Ch = wh.shape[1]
    nc = wf.shape[1]
    bm = HW if HW <= 256 else 256
    return pl.pallas_call(
        functools.partial(_head_kernel, hw=HW, bm=bm),
        out_shape=jax.ShapeDtypeStruct((B, nc), jnp.float32),
        grid=(B, pl.cdiv(HW, bm)),
        in_specs=[
            pl.BlockSpec((1, bm, Cin), lambda b, t: (b, t, 0)),
            pl.BlockSpec((Cin, Ch), lambda b, t: (0, 0)),
            pl.BlockSpec((1, Ch), lambda b, t: (0, 0)),
            pl.BlockSpec((Ch, nc), lambda b, t: (0, 0)),
            pl.BlockSpec((1, nc), lambda b, t: (0, 0)),
        ],
        out_specs=pl.BlockSpec((1, nc), lambda b, t: (b, 0)),
        scratch_shapes=[pltpu.VMEM((1, Ch), jnp.float32)],
        compiler_params=_cp("parallel", "arbitrary"),
    )(x, wh, bh.reshape(1, Ch), wf, bf.reshape(1, nc))


# ----------------------------------------------------------------------------
# Spectrogram front-end (log_specgram + get_3d_spec semantics)
# ----------------------------------------------------------------------------
FS = 16000
NPERSEG = int(round(40 * FS / 1000.0))      # 640
NOVERLAP = int(round(20 * FS / 1000.0))     # 320
STEP = NPERSEG - NOVERLAP                   # 320
NFREQ = NPERSEG // 2 + 1                    # 321
NFREQ_PAD = 384                             # lane-dense (multiple of 128)
EPS = 1e-10


def _spec_kernel(fr_ref, win_ref, dft_ref, scale_ref, o_ref):
    fr = fr_ref[...] * win_ref[...]
    z = jnp.dot(fr, dft_ref[...], preferred_element_type=jnp.float32)
    re = z[:, :NFREQ_PAD]
    im = z[:, NFREQ_PAD:]
    power = (re * re + im * im) * scale_ref[...]
    o_ref[...] = jnp.log(power + EPS)


def compute_spec_features(wave):
    """wave:[B, L] f32 -> [B, 3, T, 321] (NCHW image: log-spec / delta / delta2)."""
    B, L = wave.shape
    T = (L - NPERSEG) // STEP + 1
    assert NPERSEG == 2 * STEP
    # 50%-overlap framing via two shifted chunk views (no per-frame slicing loop).
    chunks = wave[:, : (T + 1) * STEP].reshape(B, T + 1, STEP)
    frames = jnp.concatenate([chunks[:, :T, :], chunks[:, 1:T + 1, :]], axis=2)
    frames = frames.reshape(B * T, NPERSEG)

    n = np.arange(NPERSEG, dtype=np.float64)
    win = 0.5 - 0.5 * np.cos(2.0 * np.pi * n / NPERSEG)          # periodic hann
    f = np.arange(NFREQ, dtype=np.float64)
    ang = 2.0 * np.pi * np.outer(n, f) / NPERSEG
    dft = np.zeros((NPERSEG, 2 * NFREQ_PAD), np.float32)         # [cos | sin], one MXU pass
    dft[:, :NFREQ] = np.cos(ang)
    dft[:, NFREQ_PAD:NFREQ_PAD + NFREQ] = np.sin(ang)
    psd_scale = 1.0 / (FS * np.sum(win * win))                   # scipy 'density' scaling
    scale = np.full((NFREQ_PAD,), 2.0 * psd_scale, np.float64)
    scale[0] = psd_scale
    scale[NFREQ - 1] = psd_scale                                 # DC / Nyquist not doubled
    scale[NFREQ:] = 0.0

    M = B * T
    bm = M if M <= 256 else 256
    base = pl.pallas_call(
        _spec_kernel,
        out_shape=jax.ShapeDtypeStruct((M, NFREQ_PAD), jnp.float32),
        grid=(pl.cdiv(M, bm),),
        in_specs=[
            pl.BlockSpec((bm, NPERSEG), lambda i: (i, 0)),
            pl.BlockSpec((1, NPERSEG), lambda i: (0, 0)),
            pl.BlockSpec((NPERSEG, 2 * NFREQ_PAD), lambda i: (0, 0)),
            pl.BlockSpec((1, NFREQ_PAD), lambda i: (0, 0)),
        ],
        out_specs=pl.BlockSpec((bm, NFREQ_PAD), lambda i: (i, 0)),
        compiler_params=_cp("parallel"),
    )(frames,
      jnp.asarray(win, jnp.float32).reshape(1, NPERSEG),
      jnp.asarray(dft),
      jnp.asarray(scale, jnp.float32).reshape(1, NFREQ_PAD))
    base = base[:, :NFREQ].reshape(B, T, NFREQ)

    # delta / delta2 along the frequency axis, exactly as get_3d_spec on [T, F].
    d = base[..., 1:] - base[..., :-1]
    delta = jnp.concatenate([d[..., :1], d], axis=-1)
    d2 = delta[..., 1:] - delta[..., :-1]
    delta2 = jnp.concatenate([d2[..., :1], d2], axis=-1)
    return jnp.stack([base, delta, delta2], axis=1)              # [B, 3, T, F]


# ----------------------------------------------------------------------------
# EfficientNet-B2 (torchvision config) with deterministic synthetic parameters
# ----------------------------------------------------------------------------
# (expand_ratio, kernel, stride, in_ch, out_ch, num_layers)
B2_CONFIG = [
    (1, 3, 1, 32, 16, 2),
    (6, 3, 2, 16, 24, 3),
    (6, 5, 2, 24, 48, 3),
    (6, 3, 2, 48, 88, 4),
    (6, 5, 1, 88, 120, 4),
    (6, 5, 2, 120, 208, 5),
    (6, 3, 1, 208, 352, 2),
]
STEM_CH = 32
HEAD_CH = 1408


def make_params(num_classes, key):
    keys = iter(jax.random.split(key, 512))
    nk = lambda: next(keys)

    def conv_w(kh, kw, cin, cout):                 # kaiming_normal fan_out
        std = math.sqrt(2.0 / (kh * kw * cout))
        return jax.random.normal(nk(), (kh, kw, cin, cout), jnp.float32) * std

    def dw_w(k, c):                                # depthwise: fan_out = k*k
        std = math.sqrt(2.0 / (k * k))
        return jax.random.normal(nk(), (k, k, c), jnp.float32) * std

    def fold_bn(w, cout, eps=1e-5):
        # eval-mode BN with PyTorch-default params (gamma=1, beta=0, mean=0, var=1)
        gamma = jnp.ones((cout,), jnp.float32)
        beta = jnp.zeros((cout,), jnp.float32)
        mean = jnp.zeros((cout,), jnp.float32)
        var = jnp.ones((cout,), jnp.float32)
        sc = gamma / jnp.sqrt(var + eps)
        return (w * sc).astype(jnp.bfloat16), (beta - mean * sc)

    params = {}
    params["stem_w"], params["stem_b"] = fold_bn(conv_w(3, 3, 3, STEM_CH), STEM_CH)

    blocks = []
    for (exp, k, s, cin, cout, nlayers) in B2_CONFIG:
        for li in range(nlayers):
            in_c = cin if li == 0 else cout
            stride = s if li == 0 else 1
            exp_c = in_c * exp
            sq_c = max(1, in_c // 4)
            blk = {"k": k, "stride": stride, "in": in_c, "out": cout, "exp": exp_c}
            if exp != 1:
                blk["expand_w"], blk["expand_b"] = fold_bn(
                    conv_w(1, 1, in_c, exp_c).reshape(in_c, exp_c), exp_c)
            wdw, bdw = fold_bn(dw_w(k, exp_c), exp_c)
            blk["dw_w"] = wdw.reshape(k * k, 1, exp_c)
            blk["dw_b"] = bdw.reshape(1, 1, exp_c)
            blk["se1_w"] = conv_w(1, 1, exp_c, sq_c).reshape(exp_c, sq_c).astype(jnp.bfloat16)
            blk["se1_b"] = jnp.zeros((1, sq_c), jnp.float32)
            blk["se2_w"] = conv_w(1, 1, sq_c, exp_c).reshape(sq_c, exp_c).astype(jnp.bfloat16)
            blk["se2_b"] = jnp.zeros((1, exp_c), jnp.float32)
            blk["proj_w"], blk["proj_b"] = fold_bn(
                conv_w(1, 1, exp_c, cout).reshape(exp_c, cout), cout)
            blocks.append(blk)
    params["blocks"] = blocks

    params["head_w"], params["head_b"] = fold_bn(
        conv_w(1, 1, 352, HEAD_CH).reshape(352, HEAD_CH), HEAD_CH)
    r = 1.0 / math.sqrt(num_classes)               # torchvision classifier init range
    params["fc_w"] = jax.random.uniform(nk(), (HEAD_CH, num_classes), jnp.float32,
                                        -r, r).astype(jnp.bfloat16)
    params["fc_b"] = jnp.zeros((num_classes,), jnp.float32)
    return params


def mbconv(x, blk):
    B, H, W, _ = x.shape
    inp = x
    h = x
    if "expand_w" in blk:
        h = matmul_bias(h.reshape(B * H * W, blk["in"]), blk["expand_w"],
                        blk["expand_b"], act="silu").reshape(B, H, W, blk["exp"])
    h = depthwise_conv_silu(h, blk["dw_w"], blk["dw_b"], blk["stride"])
    Bo, Ho, Wo, Ce = h.shape
    h3 = h.reshape(Bo, Ho * Wo, Ce)
    se = fused_se(h3, blk["se1_w"], blk["se1_b"], blk["se2_w"], blk["se2_b"])
    res = None
    if blk["stride"] == 1 and blk["in"] == blk["out"]:
        res = inp.reshape(B, H * W, blk["in"])     # stochastic depth = identity in eval
    out = fused_se_project(h3, se, blk["proj_w"], blk["proj_b"], res)
    return out.reshape(Bo, Ho, Wo, blk["out"])


def efficientnet_forward(params, img_nchw):
    x = jnp.transpose(img_nchw, (0, 2, 3, 1)).astype(jnp.bfloat16)   # NCHW -> NHWC, bf16
    x = conv2d(x, params["stem_w"], params["stem_b"], stride=2, act="silu")
    for blk in params["blocks"]:
        x = mbconv(x, blk)
    B, H, W, C = x.shape
    # fused: head 1x1 conv + SiLU + AdaptiveAvgPool2d(1) + flatten + Dropout(id) + Linear
    return fused_head(x.reshape(B, H * W, C), params["head_w"], params["head_b"],
                      params["fc_w"], params["fc_b"])


def emonet_efficientnet_forward(params, wave):
    """wave: [B, num_samples] float32  ->  logits [B, num_classes] float32."""
    spec = compute_spec_features(wave)                            # [B, 3, T, 321]
    return efficientnet_forward(params, spec)


# ----------------------------------------------------------------------------
if __name__ == "__main__":
    num_classes = 8
    B = 2
    T_frames = 16
    L = NPERSEG + STEP * (T_frames - 1)                           # 5440 samples

    key = jax.random.PRNGKey(0)
    k_wave, k_params = jax.random.split(key)
    wave = jax.random.normal(k_wave, (B, L), jnp.float32)
    params = make_params(num_classes, k_params)

    logits = emonet_efficientnet_forward(params, wave)
    logits = jax.block_until_ready(logits)

    assert logits.shape == (B, num_classes), logits.shape
    assert logits.dtype == jnp.float32
    assert bool(jnp.all(jnp.isfinite(logits)))
    print("KERNEL_OK")
</pallas_src>

<mosaic_0001>
module attributes {stable_mosaic.version = 11 : i64} {
  func.func @_spec_kernel(%arg0: i32, %arg1: memref<32x640xf32, #tpu.memory_space<vmem>>, %arg2: memref<1x640xf32, #tpu.memory_space<vmem>>, %arg3: memref<640x768xf32, #tpu.memory_space<vmem>>, %arg4: memref<1x384xf32, #tpu.memory_space<vmem>>, %arg5: memref<32x384xf32, #tpu.memory_space<vmem>>) attributes {dimension_semantics = [#tpu.dimension_semantics<parallel>], iteration_bounds = array<i64: 1>, scalar_prefetch = 0 : i64, scratch_operands = 0 : i64, tpu.core_type = #tpu.core_type<tc>, window_params = [{transform_indices = @transform_0, window_bounds = array<i64: 32, 640>}, {pipeline_mode = #tpu.pipeline_mode<synchronous>, transform_indices = @transform_1, window_bounds = array<i64: 1, 640>}, {pipeline_mode = #tpu.pipeline_mode<synchronous>, transform_indices = @transform_2, window_bounds = array<i64: 640, 768>}, {pipeline_mode = #tpu.pipeline_mode<synchronous>, transform_indices = @transform_3, window_bounds = array<i64: 1, 384>}, {transform_indices = @transform_4, window_bounds = array<i64: 32, 384>}]} {
    %c0 = arith.constant 0 : index
    %c0_0 = arith.constant 0 : index
    %0 = vector.load %arg1[%c0, %c0_0] : memref<32x640xf32, #tpu.memory_space<vmem>>, vector<32x640xf32>
    %c0_1 = arith.constant 0 : index
    %c0_2 = arith.constant 0 : index
    %1 = vector.load %arg2[%c0_1, %c0_2] : memref<1x640xf32, #tpu.memory_space<vmem>>, vector<1x640xf32>
    %2 = vector.broadcast %1 : vector<1x640xf32> to vector<32x640xf32>
    %3 = arith.mulf %0, %2 : vector<32x640xf32>
    %c0_3 = arith.constant 0 : index
    %c0_4 = arith.constant 0 : index
    %4 = vector.load %arg3[%c0_3, %c0_4] : memref<640x768xf32, #tpu.memory_space<vmem>>, vector<640x768xf32>
    %cst = arith.constant dense<0.000000e+00> : vector<32x768xf32>
    %5 = tpu.matmul %3, %4, %cst {dimension_numbers = #tpu.dot_dimension_numbers<[1], [0], [0], [1], [0, 0, 1, 1], [], []>} : vector<32x640xf32>, vector<640x768xf32>, vector<32x768xf32> -> vector<32x768xf32>
    %6 = vector.extract_strided_slice %5 {offsets = [0, 0], sizes = [32, 384], strides = [1, 1]} : vector<32x768xf32> to vector<32x384xf32>
    %7 = vector.extract_strided_slice %5 {offsets = [0, 384], sizes = [32, 384], strides = [1, 1]} : vector<32x768xf32> to vector<32x384xf32>
    %8 = arith.mulf %6, %6 : vector<32x384xf32>
    %9 = arith.mulf %7, %7 : vector<32x384xf32>
    %10 = arith.addf %8, %9 : vector<32x384xf32>
    %c0_5 = arith.constant 0 : index
    %c0_6 = arith.constant 0 : index
    %11 = vector.load %arg4[%c0_5, %c0_6] : memref<1x384xf32, #tpu.memory_space<vmem>>, vector<1x384xf32>
    %12 = vector.broadcast %11 : vector<1x384xf32> to vector<32x384xf32>
    %13 = arith.mulf %10, %12 : vector<32x384xf32>
    %cst_7 = arith.constant 1.000000e-10 : f32
    %14 = vector.broadcast %cst_7 : f32 to vector<32x384xf32>
    %15 = arith.addf %13, %14 : vector<32x384xf32>
    %16 = math.log %15 : vector<32x384xf32>
    %c0_8 = arith.constant 0 : index
    %c0_9 = arith.constant 0 : index
    %17 = vector.load %arg5[%c0_8, %c0_9] : memref<32x384xf32, #tpu.memory_space<vmem>>, vector<32x384xf32>
    tpu.vector_store %arg5[%c0_8, %c0_9], %16 {strides = array<i32>} : memref<32x384xf32, #tpu.memory_space<vmem>>, vector<32x384xf32>,
    return
  }
  func.func @transform_0(%arg0: i32) -> (i32, i32) {
    %c0_i32 = arith.constant 0 : i32
    %c0_i32_0 = arith.constant 0 : i32
    return %arg0, %c0_i32 : i32, i32
  }
  func.func @transform_1(%arg0: i32) -> (i32, i32) {
    %c0_i32 = arith.constant 0 : i32
    %c0_i32_0 = arith.constant 0 : i32
    %c0_i32_1 = arith.constant 0 : i32
    return %c0_i32, %c0_i32_0 : i32, i32
  }
  func.func @transform_2(%arg0: i32) -> (i32, i32) {
    %c0_i32 = arith.constant 0 : i32
    %c0_i32_0 = arith.constant 0 : i32
    %c0_i32_1 = arith.constant 0 : i32
    return %c0_i32, %c0_i32_0 : i32, i32
  }
  func.func @transform_3(%arg0: i32) -> (i32, i32) {
    %c0_i32 = arith.constant 0 : i32
    %c0_i32_0 = arith.constant 0 : i32
    %c0_i32_1 = arith.constant 0 : i32
    return %c0_i32, %c0_i32_0 : i32, i32
  }
  func.func @transform_4(%arg0: i32) -> (i32, i32) {
    %c0_i32 = arith.constant 0 : i32
    %c0_i32_0 = arith.constant 0 : i32
    return %arg0, %c0_i32 : i32, i32
  }
}

</mosaic_0001>

<llo_original>
// kernel: tpu_custom_call.1
$region0: #{tpu_custom_call.1}
  #allocation0 [shape = 'u32[]', space=smem, size = 0x4, offset = 0x4, fixed_abs, tag = 'smem constant byte address 0x4 - core index']
  #allocation1 [shape = 'u32[144,128]{1,0:T(1,128)}', space=vmem, size = 0x12000, scoped, tag = 'internal scratch']
  %s0 = inlined_call_operand.hbm [shape: f32[32,640], index: 0, kind: input, shape index: {}]
  %s1 = inlined_call_operand.hbm [shape: f32[1,640], index: 1, kind: input, shape index: {}]
  %s2 = inlined_call_operand.hbm [shape: f32[640,768], index: 2, kind: input, shape index: {}]
  %s3 = inlined_call_operand.hbm [shape: f32[1,384], index: 3, kind: input, shape index: {}]
  %s4 = inlined_call_operand.hbm [shape: f32[32,384], index: 4, kind: output, shape index: {}]
  %s5 = sld [smem:[#allocation0]]
  $region42: #{tpu_custom_call.1} parent=0
    _
  %s7 = ssub.s32 1, %s5
  %s8 = scalar_select 0, %s7, %s5
  $region1: #{tpu_custom_call.1} parent=0
    #allocation2 [shape = 'u8[81920]{0}', space=vmem, size = 0x14000, scoped, tag = 'input window, operand 0, single buffered']
    #allocation3 [shape = 's32[1]{0}', space=sflag, size = 0x4, scoped, tag = 'scoped memory for tpu_custom_call.1']
    #allocation4 [shape = 's32[1]{0}', space=sflag, size = 0x4, scoped, tag = 'scoped memory for tpu_custom_call.1']
    #allocation5 [shape = 'u8[2560]{0}', space=vmem, size = 0xc00, scoped, tag = 'input window, operand 1, single buffered']
    #allocation6 [shape = 's32[1]{0}', space=sflag, size = 0x4, scoped, tag = 'scoped memory for tpu_custom_call.1']
    #allocation7 [shape = 'u8[1966080]{0}', space=vmem, size = 0x1e0000, scoped, tag = 'input window, operand 2, single buffered']
    #allocation8 [shape = 'u8[1536]{0}', space=vmem, size = 0x800, scoped, tag = 'input window, operand 3, single buffered']
    #allocation9 [shape = 's32[1]{0}', space=sflag, size = 0x4, scoped, tag = 'scoped memory for tpu_custom_call.1']
    #allocation10 [shape = 'u8[49152]{0}', space=vmem, size = 0xc000, scoped, tag = 'output window, operand 0, single buffered']
    %9 = vsyncpa [#allocation3], 0
    %10 = vsyncpa [#allocation6], 0
    %11 = vsyncpa [#allocation9], 0
    %12 = vsyncpa [#allocation4], 0
    // Predicated region
    $region2: #{tpu_custom_call.1} parent=1 // pred_check
      _
    $region3: #{tpu_custom_call.1} parent=1 // pred_check_branch
      %14 = sbr.rel (0) target = $region5
    $region4: #{tpu_custom_call.1} parent=1 // pred_region
      %s16 = ssub.s32 2560, 2560
      %17 = vsyncadd [#allocation3], %s16
      %s18 = sshll.u32 [#allocation2], 4
      %s19 = int_to_ptr.vmem [resolvable:$true] %s18
      %24 = dma.hbm_to_vmem [thread:$0]  %s0, 2560, %s19, [#allocation3], 640, 640, 40
    $region5: #{tpu_custom_call.1} parent=1 // pred_fallthru
      _
    // Predicated region
    $region6: #{tpu_custom_call.1} parent=1 // pred_check
      _
    $region7: #{tpu_custom_call.1} parent=1 // pred_check_branch
      %26 = sbr.rel (0) target = $region9
    $region8: #{tpu_custom_call.1} parent=1 // pred_region
      %s28 = ssub.s32 80, 80
      %29 = vsyncadd [#allocation6], %s28
      %s31 = sshll.u32 [#allocation5], 4
      %s32 = int_to_ptr.vmem [resolvable:$true] %s31
      %34 = dma.hbm_to_vmem [thread:$0]  %s1, 80, %s32, [#allocation6]
    $region9: #{tpu_custom_call.1} parent=1 // pred_fallthru
      _
    // Predicated region
    $region10: #{tpu_custom_call.1} parent=1 // pred_check
      _
    $region11: #{tpu_custom_call.1} parent=1 // pred_check_branch
      %36 = sbr.rel (0) target = $region13
    $region12: #{tpu_custom_call.1} parent=1 // pred_region
      %s38 = ssub.s32 61440, 61440
      %39 = vsyncadd [#allocation6], %s38
      %s40 = sshll.u32 [#allocation7], 4
      %s41 = int_to_ptr.vmem [resolvable:$true] %s40
      %46 = dma.hbm_to_vmem [thread:$0]  %s2, 61440, %s41, [#allocation6], 768, 768, 48
    $region13: #{tpu_custom_call.1} parent=1 // pred_fallthru
      _
    // Predicated region
    $region14: #{tpu_custom_call.1} parent=1 // pred_check
      _
    $region15: #{tpu_custom_call.1} parent=1 // pred_check_branch
      %48 = sbr.rel (0) target = $region17
    $region16: #{tpu_custom_call.1} parent=1 // pred_region
      %s50 = ssub.s32 48, 48
      %51 = vsyncadd [#allocation9], %s50
      %s53 = sshll.u32 [#allocation8], 4
      %s54 = int_to_ptr.vmem [resolvable:$true] %s53
      %56 = dma.hbm_to_vmem [thread:$0]  %s3, 48, %s54, [#allocation9]
    $region17: #{tpu_custom_call.1} parent=1 // pred_fallthru
      _
    // Predicated region
    $region18: #{tpu_custom_call.1} parent=1 // pred_check
      _
    $region19: #{tpu_custom_call.1} parent=1 // pred_check_branch
      %58 = sbr.rel (0) target = $region21
    $region20: #{tpu_custom_call.1} parent=1 // pred_region
      %59 = dma.done [#allocation3], 2560
    $region21: #{tpu_custom_call.1} parent=1 // pred_fallthru
      _
    // Predicated region
    $region22: #{tpu_custom_call.1} parent=1 // pred_check
      _
    $region23: #{tpu_custom_call.1} parent=1 // pred_check_branch
      %61 = sbr.rel (0) target = $region25
    $region24: #{tpu_custom_call.1} parent=1 // pred_region
      %62 = dma.done [#allocation6], 80
    $region25: #{tpu_custom_call.1} parent=1 // pred_fallthru
      _
    // Predicated region
    $region26: #{tpu_custom_call.1} parent=1 // pred_check
      _
    $region27: #{tpu_custom_call.1} parent=1 // pred_check_branch
      %64 = sbr.rel (0) target = $region29
    $region28: #{tpu_custom_call.1} parent=1 // pred_region
      %65 = dma.done [#allocation6], 61440
    $region29: #{tpu_custom_call.1} parent=1 // pred_fallthru
      _
    // Predicated region
    $region30: #{tpu_custom_call.1} parent=1 // pred_check
      _
    $region31: #{tpu_custom_call.1} parent=1 // pred_check_branch
      %67 = sbr.rel (0) target = $region33
    $region32: #{tpu_custom_call.1} parent=1 // pred_region
      %68 = dma.done [#allocation9], 48
    $region33: #{tpu_custom_call.1} parent=1 // pred_fallthru
      _
    %v69 = vld [vmem:[#allocation2] sm:$0xff]
    %v70 = vld [vmem:[#allocation2 + $0x8] sm:$0xff]
    %v71 = vld [vmem:[#allocation2 + $0x10] sm:$0xff]
    %v72 = vld [vmem:[#allocation2 + $0x18] sm:$0xff]
    %v73 = vld [vmem:[#allocation2 + $0x20] sm:$0xff]
    %v74 = vld [vmem:[#allocation2 + $0x28] sm:$0xff]
    %v75 = vld [vmem:[#allocation2 + $0x30] sm:$0xff]
    %v76 = vld [vmem:[#allocation2 + $0x38] sm:$0xff]
    %v77 = vld [vmem:[#allocation2 + $0x40] sm:$0xff]
    %v78 = vld [vmem:[#allocation2 + $0x48] sm:$0xff]
    %v79 = vld [vmem:[#allocation2 + $0x50] sm:$0xff]
    %v80 = vld [vmem:[#allocation2 + $0x58] sm:$0xff]
    %v81 = vld [vmem:[#allocation2 + $0x60] sm:$0xff]
    %v82 = vld [vmem:[#allocation2 + $0x68] sm:$0xff]
    %v83 = vld [vmem:[#allocation2 + $0x70] sm:$0xff]
    %v84 = vld [vmem:[#allocation2 + $0x78] sm:$0xff]
    %v85 = vld [vmem:[#allocation2 + $0x80] sm:$0xff]
    %v86 = vld [vmem:[#allocation2 + $0x88] sm:$0xff]
    %v87 = vld [vmem:[#allocation2 + $0x90] sm:$0xff]
    %v88 = vld [vmem:[#allocation2 + $0x98] sm:$0xff]
    %v89 = vld [vmem:[#allocation5] sm:$0x1f]
    %v91 = vlaneseq
    %v92 = vshrl.u32 %v91, 7
    %v93 = vsub.s32 0, %v92
    %v94 = vrot.slane %v89, %v93
    %v95 = vlaneseq
    %v96 = vshrl.u32 %v95, 7
    %v97 = vsub.s32 1, %v96
    %v98 = vrot.slane %v89, %v97
    %v99 = vlaneseq
    %v100 = vshrl.u32 %v99, 7
    %v101 = vsub.s32 2, %v100
    %v102 = vrot.slane %v89, %v101
    %v103 = vlaneseq
    %v104 = vshrl.u32 %v103, 7
    %v105 = vsub.s32 3, %v104
    %v106 = vrot.slane %v89, %v105
    %v107 = vlaneseq
    %v108 = vshrl.u32 %v107, 7
    %v109 = vsub.s32 4, %v108
    %v110 = vrot.slane %v89, %v109
    %v116 = vmul.f32 %v69, %v94
    %v117 = vmul.f32 %v70, %v98
    %v118 = vmul.f32 %v71, %v102
    %v119 = vmul.f32 %v72, %v106
    %v120 = vmul.f32 %v73, %v110
    %v121 = vmul.f32 %v74, %v94
    %v122 = vmul.f32 %v75, %v98
    %v123 = vmul.f32 %v76, %v102
    %v124 = vmul.f32 %v77, %v106
    %v125 = vmul.f32 %v78, %v110
    %v126 = vmul.f32 %v79, %v94
    %v127 = vmul.f32 %v80, %v98
    %v128 = vmul.f32 %v81, %v102
    %v129 = vmul.f32 %v82, %v106
    %v130 = vmul.f32 %v83, %v110
    %v131 = vmul.f32 %v84, %v94
    %v132 = vmul.f32 %v85, %v98
    %v133 = vmul.f32 %v86, %v102
    %v134 = vmul.f32 %v87, %v106
    %v135 = vmul.f32 %v88, %v110
    %v136 = vld [vmem:[#allocation7] sm:$0xff]
    %v137 = vld [vmem:[#allocation7 + $0x8] sm:$0xff]
    %v138 = vld [vmem:[#allocation7 + $0x10] sm:$0xff]
    %v139 = vld [vmem:[#allocation7 + $0x18] sm:$0xff]
    %v140 = vld [vmem:[#allocation7 + $0x20] sm:$0xff]
    %v141 = vld [vmem:[#allocation7 + $0x28] sm:$0xff]
    %v142 = vld [vmem:[#allocation7 + $0x30] sm:$0xff]
    %v143 = vld [vmem:[#allocation7 + $0x38] sm:$0xff]
    %v144 = vld [vmem:[#allocation7 + $0x40] sm:$0xff]
    %v145 = vld [vmem:[#allocation7 + $0x48] sm:$0xff]
    %v146 = vld [vmem:[#allocation7 + $0x50] sm:$0xff]
    %v147 = vld [vmem:[#allocation7 + $0x58] sm:$0xff]
    %v148 = vld [vmem:[#allocation7 + $0x60] sm:$0xff]
    %v149 = vld [vmem:[#allocation7 + $0x68] sm:$0xff]
    %v150 = vld [vmem:[#allocation7 + $0x70] sm:$0xff]
    %v151 = vld [vmem:[#allocation7 + $0x78] sm:$0xff]
    %v152 = vld [vmem:[#allocation7 + $0x80] sm:$0xff]
    %v153 = vld [vmem:[#allocation7 + $0x88] sm:$0xff]
    %v154 = vld [vmem:[#allocation7 + $0x90] sm:$0xff]
    %v155 = vld [vmem:[#allocation7 + $0x98] sm:$0xff]
    %v156 = vld [vmem:[#allocation7 + $0xa0] sm:$0xff]
    %v157 = vld [vmem:[#allocation7 + $0xa8] sm:$0xff]
    %v158 = vld [vmem:[#allocation7 + $0xb0] sm:$0xff]
    %v159 = vld [vmem:[#allocation7 + $0xb8] sm:$0xff]
    %v160 = vld [vmem:[#allocation7 + $0xc0] sm:$0xff]
    %v161 = vld [vmem:[#allocation7 + $0xc8] sm:$0xff]
    %v162 = vld [vmem:[#allocation7 + $0xd0] sm:$0xff]
    %v163 = vld [vmem:[#allocation7 + $0xd8] sm:$0xff]
    %v164 = vld [vmem:[#allocation7 + $0xe0] sm:$0xff]
    %v165 = vld [vmem:[#allocation7 + $0xe8] sm:$0xff]
    %v166 = vld [vmem:[#allocation7 + $0xf0] sm:$0xff]
    %v167 = vld [vmem:[#allocation7 + $0xf8] sm:$0xff]
    %v168 = vld [vmem:[#allocation7 + $0x100] sm:$0xff]
    %v169 = vld [vmem:[#allocation7 + $0x108] sm:$0xff]
    %v170 = vld [vmem:[#allocation7 + $0x110] sm:$0xff]
    %v171 = vld [vmem:[#allocation7 + $0x118] sm:$0xff]
    %v172 = vld [vmem:[#allocation7 + $0x120] sm:$0xff]
    %v173 = vld [vmem:[#allocation7 + $0x128] sm:$0xff]
    %v174 = vld [vmem:[#allocation7 + $0x130] sm:$0xff]
    %v175 = vld [vmem:[#allocation7 + $0x138] sm:$0xff]
    %v176 = vld [vmem:[#allocation7 + $0x140] sm:$0xff]
    %v177 = vld [vmem:[#allocation7 + $0x148] sm:$0xff]
    %v178 = vld [vmem:[#allocation7 + $0x150] sm:$0xff]
    %v179 = vld [vmem:[#allocation7 + $0x158] sm:$0xff]
    %v180 = vld [vmem:[#allocation7 + $0x160] sm:$0xff]
    %v181 = vld [vmem:[#allocation7 + $0x168] sm:$0xff]
    %v182 = vld [vmem:[#allocation7 + $0x170] sm:$0xff]
    %v183 = vld [vmem:[#allocation7 + $0x178] sm:$0xff]
    %v184 = vld [vmem:[#allocation7 + $0x180] sm:$0xff]
    %v185 = vld [vmem:[#allocation7 + $0x188] sm:$0xff]
    %v186 = vld [vmem:[#allocation7 + $0x190] sm:$0xff]
    %v187 = vld [vmem:[#allocation7 + $0x198] sm:$0xff]
    %v188 = vld [vmem:[#allocation7 + $0x1a0] sm:$0xff]
    %v189 = vld [vmem:[#allocation7 + $0x1a8] sm:$0xff]
    %v190 = vld [vmem:[#allocation7 + $0x1b0] sm:$0xff]
    %v191 = vld [vmem:[#allocation7 + $0x1b8] sm:$0xff]
    %v192 = vld [vmem:[#allocation7 + $0x1c0] sm:$0xff]
    %v193 = vld [vmem:[#allocation7 + $0x1c8] sm:$0xff]
    %v194 = vld [vmem:[#allocation7 + $0x1d0] sm:$0xff]
    %v195 = vld [vmem:[#allocation7 + $0x1d8] sm:$0xff]
    %v196 = vld [vmem:[#allocation7 + $0x1e0] sm:$0xff]
    %v197 = vld [vmem:[#allocation7 + $0x1e8] sm:$0xff]
    %v198 = vld [vmem:[#allocation7 + $0x1f0] sm:$0xff]
    %v199 = vld [vmem:[#allocation7 + $0x1f8] sm:$0xff]
    %v200 = vld [vmem:[#allocation7 + $0x200] sm:$0xff]
    %v201 = vld [vmem:[#allocation7 + $0x208] sm:$0xff]
    %v202 = vld [vmem:[#allocation7 + $0x210] sm:$0xff]
    %v203 = vld [vmem:[#allocation7 + $0x218] sm:$0xff]
    %v204 = vld [vmem:[#allocation7 + $0x220] sm:$0xff]
    %v205 = vld [vmem:[#allocation7 + $0x228] sm:$0xff]
    %v206 = vld [vmem:[#allocation7 + $0x230] sm:$0xff]
    %v207 = vld [vmem:[#allocation7 + $0x238] sm:$0xff]
    %v208 = vld [vmem:[#allocation7 + $0x240] sm:$0xff]
    %v209 = vld [vmem:[#allocation7 + $0x248] sm:$0xff]
    %v210 = vld [vmem:[#allocation7 + $0x250] sm:$0xff]
    %v211 = vld [vmem:[#allocation7 + $0x258] sm:$0xff]
    %v212 = vld [vmem:[#allocation7 + $0x260] sm:$0xff]
    %v213 = vld [vmem:[#allocation7 + $0x268] sm:$0xff]
    %v214 = vld [vmem:[#allocation7 + $0x270] sm:$0xff]
    %v215 = vld [vmem:[#allocation7 + $0x278] sm:$0xff]
    %v216 = vld [vmem:[#allocation7 + $0x280] sm:$0xff]
    %v217 = vld [vmem:[#allocation7 + $0x288] sm:$0xff]
    %v218 = vld [vmem:[#allocation7 + $0x290] sm:$0xff]
    %v219 = vld [vmem:[#allocation7 + $0x298] sm:$0xff]
    %v220 = vld [vmem:[#allocation7 + $0x2a0] sm:$0xff]
    %v221 = vld [vmem:[#allocation7 + $0x2a8] sm:$0xff]
    %v222 = vld [vmem:[#allocation7 + $0x2b0] sm:$0xff]
    %v223 = vld [vmem:[#allocation7 + $0x2b8] sm:$0xff]
    %v224 = vld [vmem:[#allocation7 + $0x2c0] sm:$0xff]
    %v225 = vld [vmem:[#allocation7 + $0x2c8] sm:$0xff]
    %v226 = vld [vmem:[#allocation7 + $0x2d0] sm:$0xff]
    %v227 = vld [vmem:[#allocation7 + $0x2d8] sm:$0xff]
    %v228 = vld [vmem:[#allocation7 + $0x2e0] sm:$0xff]
    %v229 = vld [vmem:[#allocation7 + $0x2e8] sm:$0xff]
    %v230 = vld [vmem:[#allocation7 + $0x2f0] sm:$0xff]
    %v231 = vld [vmem:[#allocation7 + $0x2f8] sm:$0xff]
    %v232 = vld [vmem:[#allocation7 + $0x300] sm:$0xff]
    %v233 = vld [vmem:[#allocation7 + $0x308] sm:$0xff]
    %v234 = vld [vmem:[#allocation7 + $0x310] sm:$0xff]
    %v235 = vld [vmem:[#allocation7 + $0x318] sm:$0xff]
    %v236 = vld [vmem:[#allocation7 + $0x320] sm:$0xff]
    %v237 = vld [vmem:[#allocation7 + $0x328] sm:$0xff]
    %v238 = vld [vmem:[#allocation7 + $0x330] sm:$0xff]
    %v239 = vld [vmem:[#allocation7 + $0x338] sm:$0xff]
    %v240 = vld [vmem:[#allocation7 + $0x340] sm:$0xff]
    %v241 = vld [vmem:[#allocation7 + $0x348] sm:$0xff]
    %v242 = vld [vmem:[#allocation7 + $0x350] sm:$0xff]
    %v243 = vld [vmem:[#allocation7 + $0x358] sm:$0xff]
    %v244 = vld [vmem:[#allocation7 + $0x360] sm:$0xff]
    %v245 = vld [vmem:[#allocation7 + $0x368] sm:$0xff]
    %v246 = vld [vmem:[#allocation7 + $0x370] sm:$0xff]
    %v247 = vld [vmem:[#allocation7 + $0x378] sm:$0xff]
    %v248 = vld [vmem:[#allocation7 + $0x380] sm:$0xff]
    %v249 = vld [vmem:[#allocation7 + $0x388] sm:$0xff]
    %v250 = vld [vmem:[#allocation7 + $0x390] sm:$0xff]
    %v251 = vld [vmem:[#allocation7 + $0x398] sm:$0xff]
    %v252 = vld [vmem:[#allocation7 + $0x3a0] sm:$0xff]
    %v253 = vld [vmem:[#allocation7 + $0x3a8] sm:$0xff]
    %v254 = vld [vmem:[#allocation7 + $0x3b0] sm:$0xff]
    %v255 = vld [vmem:[#allocation7 + $0x3b8] sm:$0xff]
    %v256 = vld [vmem:[#allocation7 + $0x3c0] sm:$0xff]
    %v257 = vld [vmem:[#allocation7 + $0x3c8] sm:$0xff]
    %v258 = vld [vmem:[#allocation7 + $0x3d0] sm:$0xff]
    %v259 = vld [vmem:[#allocation7 + $0x3d8] sm:$0xff]
    %v260 = vld [vmem:[#allocation7 + $0x3e0] sm:$0xff]
    %v261 = vld [vmem:[#allocation7 + $0x3e8] sm:$0xff]
    %v262 = vld [vmem:[#allocation7 + $0x3f0] sm:$0xff]
    %v263 = vld [vmem:[#allocation7 + $0x3f8] sm:$0xff]
    %v264 = vld [vmem:[#allocation7 + $0x400] sm:$0xff]
    %v265 = vld [vmem:[#allocation7 + $0x408] sm:$0xff]
    %v266 = vld [vmem:[#allocation7 + $0x410] sm:$0xff]
    %v267 = vld [vmem:[#allocation7 + $0x418] sm:$0xff]
    %v268 = vld [vmem:[#allocation7 + $0x420] sm:$0xff]
    %v269 = vld [vmem:[#allocation7 + $0x428] sm:$0xff]
    %v270 = vld [vmem:[#allocation7 + $0x430] sm:$0xff]
    %v271 = vld [vmem:[#allocation7 + $0x438] sm:$0xff]
    %v272 = vld [vmem:[#allocation7 + $0x440] sm:$0xff]
    %v273 = vld [vmem:[#allocation7 + $0x448] sm:$0xff]
    %v274 = vld [vmem:[#allocation7 + $0x450] sm:$0xff]
    %v275 = vld [vmem:[#allocation7 + $0x458] sm:$0xff]
    %v276 = vld [vmem:[#allocation7 + $0x460] sm:$0xff]
    %v277 = vld [vmem:[#allocation7 + $0x468] sm:$0xff]
    %v278 = vld [vmem:[#allocation7 + $0x470] sm:$0xff]
    %v279 = vld [vmem:[#allocation7 + $0x478] sm:$0xff]
    %v280 = vld [vmem:[#allocation7 + $0x480] sm:$0xff]
    %v281 = vld [vmem:[#allocation7 + $0x488] sm:$0xff]
    %v282 = vld [vmem:[#allocation7 + $0x490] sm:$0xff]
    %v283 = vld [vmem:[#allocation7 + $0x498] sm:$0xff]
    %v284 = vld [vmem:[#allocation7 + $0x4a0] sm:$0xff]
    %v285 = vld [vmem:[#allocation7 + $0x4a8] sm:$0xff]
    %v286 = vld [vmem:[#allocation7 + $0x4b0] sm:$0xff]
    %v287 = vld [vmem:[#allocation7 + $0x4b8] sm:$0xff]
    %v288 = vld [vmem:[#allocation7 + $0x4c0] sm:$0xff]
    %v289 = vld [vmem:[#allocation7 + $0x4c8] sm:$0xff]
    %v290 = vld [vmem:[#allocation7 + $0x4d0] sm:$0xff]
    %v291 = vld [vmem:[#allocation7 + $0x4d8] sm:$0xff]
    %v292 = vld [vmem:[#allocation7 + $0x4e0] sm:$0xff]
    %v293 = vld [vmem:[#allocation7 + $0x4e8] sm:$0xff]
    %v294 = vld [vmem:[#allocation7 + $0x4f0] sm:$0xff]
    %v295 = vld [vmem:[#allocation7 + $0x4f8] sm:$0xff]
    %v296 = vld [vmem:[#allocation7 + $0x500] sm:$0xff]
    %v297 = vld [vmem:[#allocation7 + $0x508] sm:$0xff]
    %v298 = vld [vmem:[#allocation7 + $0x510] sm:$0xff]
    %v299 = vld [vmem:[#allocation7 + $0x518] sm:$0xff]
    %v300 = vld [vmem:[#allocation7 + $0x520] sm:$0xff]
    %v301 = vld [vmem:[#allocation7 + $0x528] sm:$0xff]
    %v302 = vld [vmem:[#allocation7 + $0x530] sm:$0xff]
    %v303 = vld [vmem:[#allocation7 + $0x538] sm:$0xff]
    %v304 = vld [vmem:[#allocation7 + $0x540] sm:$0xff]
    %v305 = vld [vmem:[#allocation7 + $0x548] sm:$0xff]
    %v306 = vld [vmem:[#allocation7 + $0x550] sm:$0xff]
    %v307 = vld [vmem:[#allocation7 + $0x558] sm:$0xff]
    %v308 = vld [vmem:[#allocation7 + $0x560] sm:$0xff]
    %v309 = vld [vmem:[#allocation7 + $0x568] sm:$0xff]
    %v310 = vld [vmem:[#allocation7 + $0x570] sm:$0xff]
    %v311 = vld [vmem:[#allocation7 + $0x578] sm:$0xff]
    %v312 = vld [vmem:[#allocation7 + $0x580] sm:$0xff]
    %v313 = vld [vmem:[#allocation7 + $0x588] sm:$0xff]
    %v314 = vld [vmem:[#allocation7 + $0x590] sm:$0xff]
    %v315 = vld [vmem:[#allocation7 + $0x598] sm:$0xff]
    %v316 = vld [vmem:[#allocation7 + $0x5a0] sm:$0xff]
    %v317 = vld [vmem:[#allocation7 + $0x5a8] sm:$0xff]
    %v318 = vld [vmem:[#allocation7 + $0x5b0] sm:$0xff]
    %v319 = vld [vmem:[#allocation7 + $0x5b8] sm:$0xff]
    %v320 = vld [vmem:[#allocation7 + $0x5c0] sm:$0xff]
    %v321 = vld [vmem:[#allocation7 + $0x5c8] sm:$0xff]
    %v322 = vld [vmem:[#allocation7 + $0x5d0] sm:$0xff]
    %v323 = vld [vmem:[#allocation7 + $0x5d8] sm:$0xff]
    %v324 = vld [vmem:[#allocation7 + $0x5e0] sm:$0xff]
    %v325 = vld [vmem:[#allocation7 + $0x5e8] sm:$0xff]
    %v326 = vld [vmem:[#allocation7 + $0x5f0] sm:$0xff]
    %v327 = vld [vmem:[#allocation7 + $0x5f8] sm:$0xff]
    %v328 = vld [vmem:[#allocation7 + $0x600] sm:$0xff]
    %v329 = vld [vmem:[#allocation7 + $0x608] sm:$0xff]
    %v330 = vld [vmem:[#allocation7 + $0x610] sm:$0xff]
    %v331 = vld [vmem:[#allocation7 + $0x618] sm:$0xff]
    %v332 = vld [vmem:[#allocation7 + $0x620] sm:$0xff]
    %v333 = vld [vmem:[#allocation7 + $0x628] sm:$0xff]
    %v334 = vld [vmem:[#allocation7 + $0x630] sm:$0xff]
    %v335 = vld [vmem:[#allocation7 + $0x638] sm:$0xff]
    %v336 = vld [vmem:[#allocation7 + $0x640] sm:$0xff]
    %v337 = vld [vmem:[#allocation7 + $0x648] sm:$0xff]
    %v338 = vld [vmem:[#allocation7 + $0x650] sm:$0xff]
    %v339 = vld [vmem:[#allocation7 + $0x658] sm:$0xff]
    %v340 = vld [vmem:[#allocation7 + $0x660] sm:$0xff]
    %v341 = vld [vmem:[#allocation7 + $0x668] sm:$0xff]
    %v342 = vld [vmem:[#allocation7 + $0x670] sm:$0xff]
    %v343 = vld [vmem:[#allocation7 + $0x678] sm:$0xff]
    %v344 = vld [vmem:[#allocation7 + $0x680] sm:$0xff]
    %v345 = vld [vmem:[#allocation7 + $0x688] sm:$0xff]
    %v346 = vld [vmem:[#allocation7 + $0x690] sm:$0xff]
    %v347 = vld [vmem:[#allocation7 + $0x698] sm:$0xff]
    %v348 = vld [vmem:[#allocation7 + $0x6a0] sm:$0xff]
    %v349 = vld [vmem:[#allocation7 + $0x6a8] sm:$0xff]
    %v350 = vld [vmem:[#allocation7 + $0x6b0] sm:$0xff]
    %v351 = vld [vmem:[#allocation7 + $0x6b8] sm:$0xff]
    %v352 = vld [vmem:[#allocation7 + $0x6c0] sm:$0xff]
    %v353 = vld [vmem:[#allocation7 + $0x6c8] sm:$0xff]
    %v354 = vld [vmem:[#allocation7 + $0x6d0] sm:$0xff]
    %v355 = vld [vmem:[#allocation7 + $0x6d8] sm:$0xff]
    %v356 = vld [vmem:[#allocation7 + $0x6e0] sm:$0xff]
    %v357 = vld [vmem:[#allocation7 + $0x6e8] sm:$0xff]
    %v358 = vld [vmem:[#allocation7 + $0x6f0] sm:$0xff]
    %v359 = vld [vmem:[#allocation7 + $0x6f8] sm:$0xff]
    %v360 = vld [vmem:[#allocation7 + $0x700] sm:$0xff]
    %v361 = vld [vmem:[#allocation7 + $0x708] sm:$0xff]
    %v362 = vld [vmem:[#allocation7 + $0x710] sm:$0xff]
    %v363 = vld [vmem:[#allocation7 + $0x718] sm:$0xff]
    %v364 = vld [vmem:[#allocation7 + $0x720] sm:$0xff]
    %v365 = vld [vmem:[#allocation7 + $0x728] sm:$0xff]
    %v366 = vld [vmem:[#allocation7 + $0x730] sm:$0xff]
    %v367 = vld [vmem:[#allocation7 + $0x738] sm:$0xff]
    %v368 = vld [vmem:[#allocation7 + $0x740] sm:$0xff]
    %v369 = vld [vmem:[#allocation7 + $0x748] sm:$0xff]
    %v370 = vld [vmem:[#allocation7 + $0x750] sm:$0xff]
    %v371 = vld [vmem:[#allocation7 + $0x758] sm:$0xff]
    %v372 = vld [vmem:[#allocation7 + $0x760] sm:$0xff]
    %v373 = vld [vmem:[#allocation7 + $0x768] sm:$0xff]
    %v374 = vld [vmem:[#allocation7 + $0x770] sm:$0xff]
    %v375 = vld [vmem:[#allocation7 + $0x778] sm:$0xff]
    %v376 = vld [vmem:[#allocation7 + $0x780] sm:$0xff]
    %v377 = vld [vmem:[#allocation7 + $0x788] sm:$0xff]
    %v378 = vld [vmem:[#allocation7 + $0x790] sm:$0xff]
    %v379 = vld [vmem:[#allocation7 + $0x798] sm:$0xff]
    %v380 = vld [vmem:[#allocation7 + $0x7a0] sm:$0xff]
    %v381 = vld [vmem:[#allocation7 + $0x7a8] sm:$0xff]
    %v382 = vld [vmem:[#allocation7 + $0x7b0] sm:$0xff]
    %v383 = vld [vmem:[#allocation7 + $0x7b8] sm:$0xff]
    %v384 = vld [vmem:[#allocation7 + $0x7c0] sm:$0xff]
    %v385 = vld [vmem:[#allocation7 + $0x7c8] sm:$0xff]
    %v386 = vld [vmem:[#allocation7 + $0x7d0] sm:$0xff]
    %v387 = vld [vmem:[#allocation7 + $0x7d8] sm:$0xff]
    %v388 = vld [vmem:[#allocation7 + $0x7e0] sm:$0xff]
    %v389 = vld [vmem:[#allocation7 + $0x7e8] sm:$0xff]
    %v390 = vld [vmem:[#allocation7 + $0x7f0] sm:$0xff]
    %v391 = vld [vmem:[#allocation7 + $0x7f8] sm:$0xff]
    %v392 = vld [vmem:[#allocation7 + $0x800] sm:$0xff]
    %v393 = vld [vmem:[#allocation7 + $0x808] sm:$0xff]
    %v394 = vld [vmem:[#allocation7 + $0x810] sm:$0xff]
    %v395 = vld [vmem:[#allocation7 + $0x818] sm:$0xff]
    %v396 = vld [vmem:[#allocation7 + $0x820] sm:$0xff]
    %v397 = vld [vmem:[#allocation7 + $0x828] sm:$0xff]
    %v398 = vld [vmem:[#allocation7 + $0x830] sm:$0xff]
    %v399 = vld [vmem:[#allocation7 + $0x838] sm:$0xff]
    %v400 = vld [vmem:[#allocation7 + $0x840] sm:$0xff]
    %v401 = vld [vmem:[#allocation7 + $0x848] sm:$0xff]
    %v402 = vld [vmem:[#allocation7 + $0x850] sm:$0xff]
    %v403 = vld [vmem:[#allocation7 + $0x858] sm:$0xff]
    %v404 = vld [vmem:[#allocation7 + $0x860] sm:$0xff]
    %v405 = vld [vmem:[#allocation7 + $0x868] sm:$0xff]
    %v406 = vld [vmem:[#allocation7 + $0x870] sm:$0xff]
    %v407 = vld [vmem:[#allocation7 + $0x878] sm:$0xff]
    %v408 = vld [vmem:[#allocation7 + $0x880] sm:$0xff]
    %v409 = vld [vmem:[#allocation7 + $0x888] sm:$0xff]
    %v410 = vld [vmem:[#allocation7 + $0x890] sm:$0xff]
    %v411 = vld [vmem:[#allocation7 + $0x898] sm:$0xff]
    %v412 = vld [vmem:[#allocation7 + $0x8a0] sm:$0xff]
    %v413 = vld [vmem:[#allocation7 + $0x8a8] sm:$0xff]
    %v414 = vld [vmem:[#allocation7 + $0x8b0] sm:$0xff]
    %v415 = vld [vmem:[#allocation7 + $0x8b8] sm:$0xff]
    %v416 = vld [vmem:[#allocation7 + $0x8c0] sm:$0xff]
    %v417 = vld [vmem:[#allocation7 + $0x8c8] sm:$0xff]
    %v418 = vld [vmem:[#allocation7 + $0x8d0] sm:$0xff]
    %v419 = vld [vmem:[#allocation7 + $0x8d8] sm:$0xff]
    %v420 = vld [vmem:[#allocation7 + $0x8e0] sm:$0xff]
    %v421 = vld [vmem:[#allocation7 + $0x8e8] sm:$0xff]
    %v422 = vld [vmem:[#allocation7 + $0x8f0] sm:$0xff]
    %v423 = vld [vmem:[#allocation7 + $0x8f8] sm:$0xff]
    %v424 = vld [vmem:[#allocation7 + $0x900] sm:$0xff]
    %v425 = vld [vmem:[#allocation7 + $0x908] sm:$0xff]
    %v426 = vld [vmem:[#allocation7 + $0x910] sm:$0xff]
    %v427 = vld [vmem:[#allocation7 + $0x918] sm:$0xff]
    %v428 = vld [vmem:[#allocation7 + $0x920] sm:$0xff]
    %v429 = vld [vmem:[#allocation7 + $0x928] sm:$0xff]
    %v430 = vld [vmem:[#allocation7 + $0x930] sm:$0xff]
    %v431 = vld [vmem:[#allocation7 + $0x938] sm:$0xff]
    %v432 = vld [vmem:[#allocation7 + $0x940] sm:$0xff]
    %v433 = vld [vmem:[#allocation7 + $0x948] sm:$0xff]
    %v434 = vld [vmem:[#allocation7 + $0x950] sm:$0xff]
    %v435 = vld [vmem:[#allocation7 + $0x958] sm:$0xff]
    %v436 = vld [vmem:[#allocation7 + $0x960] sm:$0xff]
    %v437 = vld [vmem:[#allocation7 + $0x968] sm:$0xff]
    %v438 = vld [vmem:[#allocation7 + $0x970] sm:$0xff]
    %v439 = vld [vmem:[#allocation7 + $0x978] sm:$0xff]
    %v440 = vld [vmem:[#allocation7 + $0x980] sm:$0xff]
    %v441 = vld [vmem:[#allocation7 + $0x988] sm:$0xff]
    %v442 = vld [vmem:[#allocation7 + $0x990] sm:$0xff]
    %v443 = vld [vmem:[#allocation7 + $0x998] sm:$0xff]
    %v444 = vld [vmem:[#allocation7 + $0x9a0] sm:$0xff]
    %v445 = vld [vmem:[#allocation7 + $0x9a8] sm:$0xff]
    %v446 = vld [vmem:[#allocation7 + $0x9b0] sm:$0xff]
    %v447 = vld [vmem:[#allocation7 + $0x9b8] sm:$0xff]
    %v448 = vld [vmem:[#allocation7 + $0x9c0] sm:$0xff]
    %v449 = vld [vmem:[#allocation7 + $0x9c8] sm:$0xff]
    %v450 = vld [vmem:[#allocation7 + $0x9d0] sm:$0xff]
    %v451 = vld [vmem:[#allocation7 + $0x9d8] sm:$0xff]
    %v452 = vld [vmem:[#allocation7 + $0x9e0] sm:$0xff]
    %v453 = vld [vmem:[#allocation7 + $0x9e8] sm:$0xff]
    %v454 = vld [vmem:[#allocation7 + $0x9f0] sm:$0xff]
    %v455 = vld [vmem:[#allocation7 + $0x9f8] sm:$0xff]
    %v456 = vld [vmem:[#allocation7 + $0xa00] sm:$0xff]
    %v457 = vld [vmem:[#allocation7 + $0xa08] sm:$0xff]
    %v458 = vld [vmem:[#allocation7 + $0xa10] sm:$0xff]
    %v459 = vld [vmem:[#allocation7 + $0xa18] sm:$0xff]
    %v460 = vld [vmem:[#allocation7 + $0xa20] sm:$0xff]
    %v461 = vld [vmem:[#allocation7 + $0xa28] sm:$0xff]
    %v462 = vld [vmem:[#allocation7 + $0xa30] sm:$0xff]
    %v463 = vld [vmem:[#allocation7 + $0xa38] sm:$0xff]
    %v464 = vld [vmem:[#allocation7 + $0xa40] sm:$0xff]
    %v465 = vld [vmem:[#allocation7 + $0xa48] sm:$0xff]
    %v466 = vld [vmem:[#allocation7 + $0xa50] sm:$0xff]
    %v467 = vld [vmem:[#allocation7 + $0xa58] sm:$0xff]
    %v468 = vld [vmem:[#allocation7 + $0xa60] sm:$0xff]
    %v469 = vld [vmem:[#allocation7 + $0xa68] sm:$0xff]
    %v470 = vld [vmem:[#allocation7 + $0xa70] sm:$0xff]
    %v471 = vld [vmem:[#allocation7 + $0xa78] sm:$0xff]
    %v472 = vld [vmem:[#allocation7 + $0xa80] sm:$0xff]
    %v473 = vld [vmem:[#allocation7 + $0xa88] sm:$0xff]
    %v474 = vld [vmem:[#allocation7 + $0xa90] sm:$0xff]
    %v475 = vld [vmem:[#allocation7 + $0xa98] sm:$0xff]
    %v476 = vld [vmem:[#allocation7 + $0xaa0] sm:$0xff]
    %v477 = vld [vmem:[#allocation7 + $0xaa8] sm:$0xff]
    %v478 = vld [vmem:[#allocation7 + $0xab0] sm:$0xff]
    %v479 = vld [vmem:[#allocation7 + $0xab8] sm:$0xff]
    %v480 = vld [vmem:[#allocation7 + $0xac0] sm:$0xff]
    %v481 = vld [vmem:[#allocation7 + $0xac8] sm:$0xff]
    %v482 = vld [vmem:[#allocation7 + $0xad0] sm:$0xff]
    %v483 = vld [vmem:[#allocation7 + $0xad8] sm:$0xff]
    %v484 = vld [vmem:[#allocation7 + $0xae0] sm:$0xff]
    %v485 = vld [vmem:[#allocation7 + $0xae8] sm:$0xff]
    %v486 = vld [vmem:[#allocation7 + $0xaf0] sm:$0xff]
    %v487 = vld [vmem:[#allocation7 + $0xaf8] sm:$0xff]
    %v488 = vld [vmem:[#allocation7 + $0xb00] sm:$0xff]
    %v489 = vld [vmem:[#allocation7 + $0xb08] sm:$0xff]
    %v490 = vld [vmem:[#allocation7 + $0xb10] sm:$0xff]
    %v491 = vld [vmem:[#allocation7 + $0xb18] sm:$0xff]
    %v492 = vld [vmem:[#allocation7 + $0xb20] sm:$0xff]
    %v493 = vld [vmem:[#allocation7 + $0xb28] sm:$0xff]
    %v494 = vld [vmem:[#allocation7 + $0xb30] sm:$0xff]
    %v495 = vld [vmem:[#allocation7 + $0xb38] sm:$0xff]
    %v496 = vld [vmem:[#allocation7 + $0xb40] sm:$0xff]
    %v497 = vld [vmem:[#allocation7 + $0xb48] sm:$0xff]
    %v498 = vld [vmem:[#allocation7 + $0xb50] sm:$0xff]
    %v499 = vld [vmem:[#allocation7 + $0xb58] sm:$0xff]
    %v500 = vld [vmem:[#allocation7 + $0xb60] sm:$0xff]
    %v501 = vld [vmem:[#allocation7 + $0xb68] sm:$0xff]
    %v502 = vld [vmem:[#allocation7 + $0xb70] sm:$0xff]
    %v503 = vld [vmem:[#allocation7 + $0xb78] sm:$0xff]
    %v504 = vld [vmem:[#allocation7 + $0xb80] sm:$0xff]
    %v505 = vld [vmem:[#allocation7 + $0xb88] sm:$0xff]
    %v506 = vld [vmem:[#allocation7 + $0xb90] sm:$0xff]
    %v507 = vld [vmem:[#allocation7 + $0xb98] sm:$0xff]
    %v508 = vld [vmem:[#allocation7 + $0xba0] sm:$0xff]
    %v509 = vld [vmem:[#allocation7 + $0xba8] sm:$0xff]
    %v510 = vld [vmem:[#allocation7 + $0xbb0] sm:$0xff]
    %v511 = vld [vmem:[#allocation7 + $0xbb8] sm:$0xff]
    %v512 = vld [vmem:[#allocation7 + $0xbc0] sm:$0xff]
    %v513 = vld [vmem:[#allocation7 + $0xbc8] sm:$0xff]
    %v514 = vld [vmem:[#allocation7 + $0xbd0] sm:$0xff]
    %v515 = vld [vmem:[#allocation7 + $0xbd8] sm:$0xff]
    %v516 = vld [vmem:[#allocation7 + $0xbe0] sm:$0xff]
    %v517 = vld [vmem:[#allocation7 + $0xbe8] sm:$0xff]
    %v518 = vld [vmem:[#allocation7 + $0xbf0] sm:$0xff]
    %v519 = vld [vmem:[#allocation7 + $0xbf8] sm:$0xff]
    %v520 = vld [vmem:[#allocation7 + $0xc00] sm:$0xff]
    %v521 = vld [vmem:[#allocation7 + $0xc08] sm:$0xff]
    %v522 = vld [vmem:[#allocation7 + $0xc10] sm:$0xff]
    %v523 = vld [vmem:[#allocation7 + $0xc18] sm:$0xff]
    %v524 = vld [vmem:[#allocation7 + $0xc20] sm:$0xff]
    %v525 = vld [vmem:[#allocation7 + $0xc28] sm:$0xff]
    %v526 = vld [vmem:[#allocation7 + $0xc30] sm:$0xff]
    %v527 = vld [vmem:[#allocation7 + $0xc38] sm:$0xff]
    %v528 = vld [vmem:[#allocation7 + $0xc40] sm:$0xff]
    %v529 = vld [vmem:[#allocation7 + $0xc48] sm:$0xff]
    %v530 = vld [vmem:[#allocation7 + $0xc50] sm:$0xff]
    %v531 = vld [vmem:[#allocation7 + $0xc58] sm:$0xff]
    %v532 = vld [vmem:[#allocation7 + $0xc60] sm:$0xff]
    %v533 = vld [vmem:[#allocation7 + $0xc68] sm:$0xff]
    %v534 = vld [vmem:[#allocation7 + $0xc70] sm:$0xff]
    %v535 = vld [vmem:[#allocation7 + $0xc78] sm:$0xff]
    %v536 = vld [vmem:[#allocation7 + $0xc80] sm:$0xff]
    %v537 = vld [vmem:[#allocation7 + $0xc88] sm:$0xff]
    %v538 = vld [vmem:[#allocation7 + $0xc90] sm:$0xff]
    %v539 = vld [vmem:[#allocation7 + $0xc98] sm:$0xff]
    %v540 = vld [vmem:[#allocation7 + $0xca0] sm:$0xff]
    %v541 = vld [vmem:[#allocation7 + $0xca8] sm:$0xff]
    %v542 = vld [vmem:[#allocation7 + $0xcb0] sm:$0xff]
    %v543 = vld [vmem:[#allocation7 + $0xcb8] sm:$0xff]
    %v544 = vld [vmem:[#allocation7 + $0xcc0] sm:$0xff]
    %v545 = vld [vmem:[#allocation7 + $0xcc8] sm:$0xff]
    %v546 = vld [vmem:[#allocation7 + $0xcd0] sm:$0xff]
    %v547 = vld [vmem:[#allocation7 + $0xcd8] sm:$0xff]
    %v548 = vld [vmem:[#allocation7 + $0xce0] sm:$0xff]
    %v549 = vld [vmem:[#allocation7 + $0xce8] sm:$0xff]
    %v550 = vld [vmem:[#allocation7 + $0xcf0] sm:$0xff]
    %v551 = vld [vmem:[#allocation7 + $0xcf8] sm:$0xff]
    %v552 = vld [vmem:[#allocation7 + $0xd00] sm:$0xff]
    %v553 = vld [vmem:[#allocation7 + $0xd08] sm:$0xff]
    %v554 = vld [vmem:[#allocation7 + $0xd10] sm:$0xff]
    %v555 = vld [vmem:[#allocation7 + $0xd18] sm:$0xff]
    %v556 = vld [vmem:[#allocation7 + $0xd20] sm:$0xff]
    %v557 = vld [vmem:[#allocation7 + $0xd28] sm:$0xff]
    %v558 = vld [vmem:[#allocation7 + $0xd30] sm:$0xff]
    %v559 = vld [vmem:[#allocation7 + $0xd38] sm:$0xff]
    %v560 = vld [vmem:[#allocation7 + $0xd40] sm:$0xff]
    %v561 = vld [vmem:[#allocation7 + $0xd48] sm:$0xff]
    %v562 = vld [vmem:[#allocation7 + $0xd50] sm:$0xff]
    %v563 = vld [vmem:[#allocation7 + $0xd58] sm:$0xff]
    %v564 = vld [vmem:[#allocation7 + $0xd60] sm:$0xff]
    %v565 = vld [vmem:[#allocation7 + $0xd68] sm:$0xff]
    %v566 = vld [vmem:[#allocation7 + $0xd70] sm:$0xff]
    %v567 = vld [vmem:[#allocation7 + $0xd78] sm:$0xff]
    %v568 = vld [vmem:[#allocation7 + $0xd80] sm:$0xff]
    %v569 = vld [vmem:[#allocation7 + $0xd88] sm:$0xff]
    %v570 = vld [vmem:[#allocation7 + $0xd90] sm:$0xff]
    %v571 = vld [vmem:[#allocation7 + $0xd98] sm:$0xff]
    %v572 = vld [vmem:[#allocation7 + $0xda0] sm:$0xff]
    %v573 = vld [vmem:[#allocation7 + $0xda8] sm:$0xff]
    %v574 = vld [vmem:[#allocation7 + $0xdb0] sm:$0xff]
    %v575 = vld [vmem:[#allocation7 + $0xdb8] sm:$0xff]
    %v576 = vld [vmem:[#allocation7 + $0xdc0] sm:$0xff]
    %v577 = vld [vmem:[#allocation7 + $0xdc8] sm:$0xff]
    %v578 = vld [vmem:[#allocation7 + $0xdd0] sm:$0xff]
    %v579 = vld [vmem:[#allocation7 + $0xdd8] sm:$0xff]
    %v580 = vld [vmem:[#allocation7 + $0xde0] sm:$0xff]
    %v581 = vld [vmem:[#allocation7 + $0xde8] sm:$0xff]
    %v582 = vld [vmem:[#allocation7 + $0xdf0] sm:$0xff]
    %v583 = vld [vmem:[#allocation7 + $0xdf8] sm:$0xff]
    %v584 = vld [vmem:[#allocation7 + $0xe00] sm:$0xff]
    %v585 = vld [vmem:[#allocation7 + $0xe08] sm:$0xff]
    %v586 = vld [vmem:[#allocation7 + $0xe10] sm:$0xff]
    %v587 = vld [vmem:[#allocation7 + $0xe18] sm:$0xff]
    %v588 = vld [vmem:[#allocation7 + $0xe20] sm:$0xff]
    %v589 = vld [vmem:[#allocation7 + $0xe28] sm:$0xff]
    %v590 = vld [vmem:[#allocation7 + $0xe30] sm:$0xff]
    %v591 = vld [vmem:[#allocation7 + $0xe38] sm:$0xff]
    %v592 = vld [vmem:[#allocation7 + $0xe40] sm:$0xff]
    %v593 = vld [vmem:[#allocation7 + $0xe48] sm:$0xff]
    %v594 = vld [vmem:[#allocation7 + $0xe50] sm:$0xff]
    %v595 = vld [vmem:[#allocation7 + $0xe58] sm:$0xff]
    %v596 = vld [vmem:[#allocation7 + $0xe60] sm:$0xff]
    %v597 = vld [vmem:[#allocation7 + $0xe68] sm:$0xff]
    %v598 = vld [vmem:[#allocation7 + $0xe70] sm:$0xff]
    %v599 = vld [vmem:[#allocation7 + $0xe78] sm:$0xff]
    %v600 = vld [vmem:[#allocation7 + $0xe80] sm:$0xff]
    %v601 = vld [vmem:[#allocation7 + $0xe88] sm:$0xff]
    %v602 = vld [vmem:[#allocation7 + $0xe90] sm:$0xff]
    %v603 = vld [vmem:[#allocation7 + $0xe98] sm:$0xff]
    %v604 = vld [vmem:[#allocation7 + $0xea0] sm:$0xff]
    %v605 = vld [vmem:[#allocation7 + $0xea8] sm:$0xff]
    %v606 = vld [vmem:[#allocation7 + $0xeb0] sm:$0xff]
    %v607 = vld [vmem:[#allocation7 + $0xeb8] sm:$0xff]
    %v608 = vld [vmem:[#allocation7 + $0xec0] sm:$0xff]
    %v609 = vld [vmem:[#allocation7 + $0xec8] sm:$0xff]
    %v610 = vld [vmem:[#allocation7 + $0xed0] sm:$0xff]
    %v611 = vld [vmem:[#allocation7 + $0xed8] sm:$0xff]
    %v612 = vld [vmem:[#allocation7 + $0xee0] sm:$0xff]
    %v613 = vld [vmem:[#allocation7 + $0xee8] sm:$0xff]
    %v614 = vld [vmem:[#allocation7 + $0xef0] sm:$0xff]
    %v615 = vld [vmem:[#allocation7 + $0xef8] sm:$0xff]
    %616 = vmatprep.subr.mxu0 %v137
    %617 = vmatpush1.msra.mxu0 %v136
    %618 = vmatprep.subr.mxu0 %v143
    %619 = vmatpush1.msra.mxu0 %v142
    %620 = vmatprep.subr.mxu0 %v149
    %621 = vmatpush1.msra.mxu0 %v148
    %622 = vmatprep.subr.mxu0 %v155
    %623 = vmatpush1.msra.mxu0 %v154
    %624 = vmatprep.subr.mxu0 %v161
    %625 = vmatpush1.msra.mxu0 %v160
    %626 = vmatprep.subr.mxu0 %v167
    %627 = vmatpush1.msra.mxu0 %v166
    %628 = vmatprep.subr.mxu0 %v173
    %629 = vmatpush1.msra.mxu0 %v172
    %630 = vmatprep.subr.mxu0 %v179
    %631 = vmatpush1.msra.mxu0 %v178
    %632 = vmatprep.subr.mxu0 %v185
    %633 = vmatpush1.msra.mxu0 %v184
    %634 = vmatprep.subr.mxu0 %v191
    %635 = vmatpush1.msra.mxu0 %v190
    %636 = vmatprep.subr.mxu0 %v197
    %637 = vmatpush1.msra.mxu0 %v196
    %638 = vmatprep.subr.mxu0 %v203
    %639 = vmatpush1.msra.mxu0 %v202
    %640 = vmatprep.subr.mxu0 %v209
    %641 = vmatpush1.msra.mxu0 %v208
    %642 = vmatprep.subr.mxu0 %v215
    %643 = vmatpush1.msra.mxu0 %v214
    %644 = vmatprep.subr.mxu0 %v221
    %645 = vmatpush1.msra.mxu0 %v220
    %646 = vmatprep.subr.mxu0 %v227
    %647 = vmatpush1.msra.mxu0 %v226
    %648 = vmatprep.subr.mxu0 %v233
    %649 = vmatpush1.msra.mxu0 %v232
    %650 = vmatprep.subr.mxu0 %v239
    %651 = vmatpush1.msra.mxu0 %v238
    %652 = vmatprep.subr.mxu0 %v245
    %653 = vmatpush1.msra.mxu0 %v244
    %654 = vmatprep.subr.mxu0 %v251
    %655 = vmatpush1.msra.mxu0 %v250
    %656 = vmatprep.subr.mxu0 %v257
    %657 = vmatpush1.msra.mxu0 %v256
    %658 = vmatprep.subr.mxu0 %v263
    %659 = vmatpush1.msra.mxu0 %v262
    %660 = vmatprep.subr.mxu0 %v269
    %661 = vmatpush1.msra.mxu0 %v268
    %662 = vmatprep.subr.mxu0 %v275
    %663 = vmatpush1.msra.mxu0 %v274
    %664 = vmatprep.subr.mxu0 %v281
    %665 = vmatpush1.msra.mxu0 %v280
    %666 = vmatprep.subr.mxu0 %v287
    %667 = vmatpush1.msra.mxu0 %v286
    %668 = vmatprep.subr.mxu0 %v293
    %669 = vmatpush1.msra.mxu0 %v292
    %670 = vmatprep.subr.mxu0 %v299
    %671 = vmatpush1.msra.mxu0 %v298
    %672 = vmatprep.subr.mxu0 %v305
    %673 = vmatpush1.msra.mxu0 %v304
    %674 = vmatprep.subr.mxu0 %v311
    %675 = vmatpush1.msra.mxu0 %v310
    %676 = vmatprep.subr.mxu0 %v317
    %677 = vmatpush1.msra.mxu0 %v316
    %678 = vmatprep.subr.mxu0 %v323
    %679 = vmatpush1.msra.mxu0 %v322
    %680 = vmatprep.mubr.f32.mxu0 %v117
    %681 = vmatmul.mubr.f32.gmra.mrb[0].mxu0 %v116
    %v682 = vpop.f32.mrb[0].mxu0
    %v683 = vadd.f32 0.0, %v682
    %v684 = vpop.f32.mrb[0].mxu0
    %v685 = vadd.f32 0.0, %v684
    %686 = vmatprep.mubr.f32.mxu0 %v122
    %687 = vmatmul.mubr.f32.gmra.mrb[0].mxu0 %v121
    %v688 = vpop.f32.mrb[0].mxu0
    %v689 = vadd.f32 0.0, %v688
    %v690 = vpop.f32.mrb[0].mxu0
    %v691 = vadd.f32 0.0, %v690
    %692 = vmatprep.mubr.f32.mxu0 %v127
    %693 = vmatmul.mubr.f32.gmra.mrb[0].mxu0 %v126
    %v694 = vpop.f32.mrb[0].mxu0
    %v695 = vadd.f32 0.0, %v694
    %v696 = vpop.f32.mrb[0].mxu0
    %v697 = vadd.f32 0.0, %v696
    %698 = vmatprep.mubr.f32.mxu0 %v132
    %699 = vmatmul.mubr.f32.gmra.mrb[0].mxu0 %v131
    %v700 = vpop.f32.mrb[0].mxu0
    %v701 = vadd.f32 0.0, %v700
    %v702 = vpop.f32.mrb[0].mxu0
    %v703 = vadd.f32 0.0, %v702
    %704 = vdwg.mxu0
    %705 = vmatprep.subr.mxu0 %v329
    %706 = vmatpush1.msra.mxu0 %v328
    %707 = vmatprep.subr.mxu0 %v335
    %708 = vmatpush1.msra.mxu0 %v334
    %709 = vmatprep.subr.mxu0 %v341
    %710 = vmatpush1.msra.mxu0 %v340
    %711 = vmatprep.subr.mxu0 %v347
    %712 = vmatpush1.msra.mxu0 %v346
    %713 = vmatprep.subr.mxu0 %v353
    %714 = vmatpush1.msra.mxu0 %v352
    %715 = vmatprep.subr.mxu0 %v359
    %716 = vmatpush1.msra.mxu0 %v358
    %717 = vmatprep.subr.mxu0 %v365
    %718 = vmatpush1.msra.mxu0 %v364
    %719 = vmatprep.subr.mxu0 %v371
    %720 = vmatpush1.msra.mxu0 %v370
    %721 = vmatprep.subr.mxu0 %v377
    %722 = vmatpush1.msra.mxu0 %v376
    %723 = vmatprep.subr.mxu0 %v383
    %724 = vmatpush1.msra.mxu0 %v382
    %725 = vmatprep.subr.mxu0 %v389
    %726 = vmatpush1.msra.mxu0 %v388
    %727 = vmatprep.subr.mxu0 %v395
    %728 = vmatpush1.msra.mxu0 %v394
    %729 = vmatprep.subr.mxu0 %v401
    %730 = vmatpush1.msra.mxu0 %v400
    %731 = vmatprep.subr.mxu0 %v407
    %732 = vmatpush1.msra.mxu0 %v406
    %733 = vmatprep.subr.mxu0 %v413
    %734 = vmatpush1.msra.mxu0 %v412
    %735 = vmatprep.subr.mxu0 %v419
    %736 = vmatpush1.msra.mxu0 %v418
    %737 = vmatprep.subr.mxu0 %v425
    %738 = vmatpush1.msra.mxu0 %v424
    %739 = vmatprep.subr.mxu0 %v431
    %740 = vmatpush1.msra.mxu0 %v430
    %741 = vmatprep.subr.mxu0 %v437
    %742 = vmatpush1.msra.mxu0 %v436
    %743 = vmatprep.subr.mxu0 %v443
    %744 = vmatpush1.msra.mxu0 %v442
    %745 = vmatprep.subr.mxu0 %v449
    %746 = vmatpush1.msra.mxu0 %v448
    %747 = vmatprep.subr.mxu0 %v455
    %748 = vmatpush1.msra.mxu0 %v454
    %749 = vmatprep.subr.mxu0 %v461
    %750 = vmatpush1.msra.mxu0 %v460
    %751 = vmatprep.subr.mxu0 %v467
    %752 = vmatpush1.msra.mxu0 %v466
    %753 = vmatprep.subr.mxu0 %v473
    %754 = vmatpush1.msra.mxu0 %v472
    %755 = vmatprep.subr.mxu0 %v479
    %756 = vmatpush1.msra.mxu0 %v478
    %757 = vmatprep.subr.mxu0 %v485
    %758 = vmatpush1.msra.mxu0 %v484
    %759 = vmatprep.subr.mxu0 %v491
    %760 = vmatpush1.msra.mxu0 %v490
    %761 = vmatprep.subr.mxu0 %v497
    %762 = vmatpush1.msra.mxu0 %v496
    %763 = vmatprep.subr.mxu0 %v503
    %764 = vmatpush1.msra.mxu0 %v502
    %765 = vmatprep.subr.mxu0 %v509
    %766 = vmatpush1.msra.mxu0 %v508
    %767 = vmatprep.subr.mxu0 %v515
    %768 = vmatpush1.msra.mxu0 %v514
    %769 = vmatprep.mubr.f32.mxu0 %v119
    %770 = vmatmul.mubr.f32.gmra.mrb[0].mxu0 %v118
    %v771 = vpop.f32.mrb[0].mxu0
    %v772 = vadd.f32 %v683, %v771
    %v773 = vpop.f32.mrb[0].mxu0
    %v774 = vadd.f32 %v685, %v773
    %775 = vmatprep.mubr.f32.mxu0 %v124
    %776 = vmatmul.mubr.f32.gmra.mrb[0].mxu0 %v123
    %v777 = vpop.f32.mrb[0].mxu0
    %v778 = vadd.f32 %v689, %v777
    %v779 = vpop.f32.mrb[0].mxu0
    %v780 = vadd.f32 %v691, %v779
    %781 = vmatprep.mubr.f32.mxu0 %v129
    %782 = vmatmul.mubr.f32.gmra.mrb[0].mxu0 %v128
    %v783 = vpop.f32.mrb[0].mxu0
    %v784 = vadd.f32 %v695, %v783
    %v785 = vpop.f32.mrb[0].mxu0
    %v786 = vadd.f32 %v697, %v785
    %787 = vmatprep.mubr.f32.mxu0 %v134
    %788 = vmatmul.mubr.f32.gmra.mrb[0].mxu0 %v133
    %v789 = vpop.f32.mrb[0].mxu0
    %v790 = vadd.f32 %v701, %v789
    %v791 = vpop.f32.mrb[0].mxu0
    %v792 = vadd.f32 %v703, %v791
    %793 = vdwg.mxu0
    %794 = vmatprep.subr.mxu0 %v521
    %795 = vmatpush1.msra.mxu0 %v520
    %796 = vmatprep.subr.mxu0 %v527
    %797 = vmatpush1.msra.mxu0 %v526
    %798 = vmatprep.subr.mxu0 %v533
    %799 = vmatpush1.msra.mxu0 %v532
    %800 = vmatprep.subr.mxu0 %v539
    %801 = vmatpush1.msra.mxu0 %v538
    %802 = vmatprep.subr.mxu0 %v545
    %803 = vmatpush1.msra.mxu0 %v544
    %804 = vmatprep.subr.mxu0 %v551
    %805 = vmatpush1.msra.mxu0 %v550
    %806 = vmatprep.subr.mxu0 %v557
    %807 = vmatpush1.msra.mxu0 %v556
    %808 = vmatprep.subr.mxu0 %v563
    %809 = vmatpush1.msra.mxu0 %v562
    %810 = vmatprep.subr.mxu0 %v569
    %811 = vmatpush1.msra.mxu0 %v568
    %812 = vmatprep.subr.mxu0 %v575
    %813 = vmatpush1.msra.mxu0 %v574
    %814 = vmatprep.subr.mxu0 %v581
    %815 = vmatpush1.msra.mxu0 %v580
    %816 = vmatprep.subr.mxu0 %v587
    %817 = vmatpush1.msra.mxu0 %v586
    %818 = vmatprep.subr.mxu0 %v593
    %819 = vmatpush1.msra.mxu0 %v592
    %820 = vmatprep.subr.mxu0 %v599
    %821 = vmatpush1.msra.mxu0 %v598
    %822 = vmatprep.subr.mxu0 %v605
    %823 = vmatpush1.msra.mxu0 %v604
    %824 = vmatprep.subr.mxu0 %v611
    %825 = vmatpush1.msra.mxu0 %v610
    %826 = vmatprep.subr.mxu0 0.0
    %827 = vmatpush1.msra.mxu0 0.0
    %828 = vmatprep.subr.mxu0 0.0
    %829 = vmatpush1.msra.mxu0 0.0
    %830 = vmatprep.subr.mxu0 0.0
    %831 = vmatpush1.msra.mxu0 0.0
    %832 = vmatprep.subr.mxu0 0.0
    %833 = vmatpush1.msra.mxu0 0.0
    %834 = vmatprep.subr.mxu0 0.0
    %835 = vmatpush1.msra.mxu0 0.0
    %836 = vmatprep.subr.mxu0 0.0
    %837 = vmatpush1.msra.mxu0 0.0
    %838 = vmatprep.subr.mxu0 0.0
    %839 = vmatpush1.msra.mxu0 0.0
    %840 = vmatprep.subr.mxu0 0.0
    %841 = vmatpush1.msra.mxu0 0.0
    %842 = vmatprep.subr.mxu0 0.0
    %843 = vmatpush1.msra.mxu0 0.0
    %844 = vmatprep.subr.mxu0 0.0
    %845 = vmatpush1.msra.mxu0 0.0
    %846 = vmatprep.subr.mxu0 0.0
    %847 = vmatpush1.msra.mxu0 0.0
    %848 = vmatprep.subr.mxu0 0.0
    %849 = vmatpush1.msra.mxu0 0.0
    %850 = vmatprep.subr.mxu0 0.0
    %851 = vmatpush1.msra.mxu0 0.0
    %852 = vmatprep.subr.mxu0 0.0
    %853 = vmatpush1.msra.mxu0 0.0
    %854 = vmatprep.subr.mxu0 0.0
    %855 = vmatpush1.msra.mxu0 0.0
    %856 = vmatprep.subr.mxu0 0.0
    %857 = vmatpush1.msra.mxu0 0.0
    %858 = vmatprep.mubr.f32.mxu0 0.0
    %859 = vmatmul.mubr.f32.gmra.mrb[0].mxu0 %v120
    %v860 = vpop.f32.mrb[0].mxu0
    %v861 = vadd.f32 %v772, %v860
    %v862 = vpop.f32.mrb[0].mxu0
    %v863 = vadd.f32 %v774, %v862
    %864 = vmatprep.mubr.f32.mxu0 0.0
    %865 = vmatmul.mubr.f32.gmra.mrb[0].mxu0 %v125
    %v866 = vpop.f32.mrb[0].mxu0
    %v867 = vadd.f32 %v778, %v866
    %v868 = vpop.f32.mrb[0].mxu0
    %v869 = vadd.f32 %v780, %v868
    %870 = vmatprep.mubr.f32.mxu0 0.0
    %871 = vmatmul.mubr.f32.gmra.mrb[0].mxu0 %v130
    %v872 = vpop.f32.mrb[0].mxu0
    %v873 = vadd.f32 %v784, %v872
    %v874 = vpop.f32.mrb[0].mxu0
    %v875 = vadd.f32 %v786, %v874
    %876 = vmatprep.mubr.f32.mxu0 0.0
    %877 = vmatmul.mubr.f32.gmra.mrb[0].mxu0 %v135
    %v878 = vpop.f32.mrb[0].mxu0
    %v879 = vadd.f32 %v790, %v878
    %v880 = vpop.f32.mrb[0].mxu0
    %v881 = vadd.f32 %v792, %v880
    %882 = vdwg.mxu0
    %883 = vmatprep.subr.mxu0 %v139
    %884 = vmatpush1.msra.mxu0 %v138
    %885 = vmatprep.subr.mxu0 %v145
    %886 = vmatpush1.msra.mxu0 %v144
    %887 = vmatprep.subr.mxu0 %v151
    %888 = vmatpush1.msra.mxu0 %v150
    %889 = vmatprep.subr.mxu0 %v157
    %890 = vmatpush1.msra.mxu0 %v156
    %891 = vmatprep.subr.mxu0 %v163
    %892 = vmatpush1.msra.mxu0 %v162
    %893 = vmatprep.subr.mxu0 %v169
    %894 = vmatpush1.msra.mxu0 %v168
    %895 = vmatprep.subr.mxu0 %v175
    %896 = vmatpush1.msra.mxu0 %v174
    %897 = vmatprep.subr.mxu0 %v181
    %898 = vmatpush1.msra.mxu0 %v180
    %899 = vmatprep.subr.mxu0 %v187
    %900 = vmatpush1.msra.mxu0 %v186
    %901 = vmatprep.subr.mxu0 %v193
    %902 = vmatpush1.msra.mxu0 %v192
    %903 = vmatprep.subr.mxu0 %v199
    %904 = vmatpush1.msra.mxu0 %v198
    %905 = vmatprep.subr.mxu0 %v205
    %906 = vmatpush1.msra.mxu0 %v204
    %907 = vmatprep.subr.mxu0 %v211
    %908 = vmatpush1.msra.mxu0 %v210
    %909 = vmatprep.subr.mxu0 %v217
    %910 = vmatpush1.msra.mxu0 %v216
    %911 = vmatprep.subr.mxu0 %v223
    %912 = vmatpush1.msra.mxu0 %v222
    %913 = vmatprep.subr.mxu0 %v229
    %914 = vmatpush1.msra.mxu0 %v228
    %915 = vmatprep.subr.mxu0 %v235
    %916 = vmatpush1.msra.mxu0 %v234
    %917 = vmatprep.subr.mxu0 %v241
    %918 = vmatpush1.msra.mxu0 %v240
    %919 = vmatprep.subr.mxu0 %v247
    %920 = vmatpush1.msra.mxu0 %v246
    %921 = vmatprep.subr.mxu0 %v253
    %922 = vmatpush1.msra.mxu0 %v252
    %923 = vmatprep.subr.mxu0 %v259
    %924 = vmatpush1.msra.mxu0 %v258
    %925 = vmatprep.subr.mxu0 %v265
    %926 = vmatpush1.msra.mxu0 %v264
    %927 = vmatprep.subr.mxu0 %v271
    %928 = vmatpush1.msra.mxu0 %v270
    %929 = vmatprep.subr.mxu0 %v277
    %930 = vmatpush1.msra.mxu0 %v276
    %931 = vmatprep.subr.mxu0 %v283
    %932 = vmatpush1.msra.mxu0 %v282
    %933 = vmatprep.subr.mxu0 %v289
    %934 = vmatpush1.msra.mxu0 %v288
    %935 = vmatprep.subr.mxu0 %v295
    %936 = vmatpush1.msra.mxu0 %v294
    %937 = vmatprep.subr.mxu0 %v301
    %938 = vmatpush1.msra.mxu0 %v300
    %939 = vmatprep.subr.mxu0 %v307
    %940 = vmatpush1.msra.mxu0 %v306
    %941 = vmatprep.subr.mxu0 %v313
    %942 = vmatpush1.msra.mxu0 %v312
    %943 = vmatprep.subr.mxu0 %v319
    %944 = vmatpush1.msra.mxu0 %v318
    %945 = vmatprep.subr.mxu0 %v325
    %946 = vmatpush1.msra.mxu0 %v324
    %947 = vmatprep.mubr.f32.mxu0 %v117
    %948 = vmatmul.mubr.f32.gmra.mrb[0].mxu0 %v116
    %v949 = vpop.f32.mrb[0].mxu0
    %v950 = vadd.f32 0.0, %v949
    %v951 = vpop.f32.mrb[0].mxu0
    %v952 = vadd.f32 0.0, %v951
    %953 = vmatprep.mubr.f32.mxu0 %v122
    %954 = vmatmul.mubr.f32.gmra.mrb[0].mxu0 %v121
    %v955 = vpop.f32.mrb[0].mxu0
    %v956 = vadd.f32 0.0, %v955
    %v957 = vpop.f32.mrb[0].mxu0
    %v958 = vadd.f32 0.0, %v957
    %959 = vmatprep.mubr.f32.mxu0 %v127
    %960 = vmatmul.mubr.f32.gmra.mrb[0].mxu0 %v126
    %v961 = vpop.f32.mrb[0].mxu0
    %v962 = vadd.f32 0.0, %v961
    %v963 = vpop.f32.mrb[0].mxu0
    %v964 = vadd.f32 0.0, %v963
    %965 = vmatprep.mubr.f32.mxu0 %v132
    %966 = vmatmul.mubr.f32.gmra.mrb[0].mxu0 %v131
    %v967 = vpop.f32.mrb[0].mxu0
    %v968 = vadd.f32 0.0, %v967
    %v969 = vpop.f32.mrb[0].mxu0
    %v970 = vadd.f32 0.0, %v969
    %971 = vdwg.mxu0
    %972 = vmatprep.subr.mxu0 %v331
    %973 = vmatpush1.msra.mxu0 %v330
    %974 = vmatprep.subr.mxu0 %v337
    %975 = vmatpush1.msra.mxu0 %v336
    %976 = vmatprep.subr.mxu0 %v343
    %977 = vmatpush1.msra.mxu0 %v342
    %978 = vmatprep.subr.mxu0 %v349
    %979 = vmatpush1.msra.mxu0 %v348
    %980 = vmatprep.subr.mxu0 %v355
    %981 = vmatpush1.msra.mxu0 %v354
    %982 = vmatprep.subr.mxu0 %v361
    %983 = vmatpush1.msra.mxu0 %v360
    %984 = vmatprep.subr.mxu0 %v367
    %985 = vmatpush1.msra.mxu0 %v366
    %986 = vmatprep.subr.mxu0 %v373
    %987 = vmatpush1.msra.mxu0 %v372
    %988 = vmatprep.subr.mxu0 %v379
    %989 = vmatpush1.msra.mxu0 %v378
    %990 = vmatprep.subr.mxu0 %v385
    %991 = vmatpush1.msra.mxu0 %v384
    %992 = vmatprep.subr.mxu0 %v391
    %993 = vmatpush1.msra.mxu0 %v390
    %994 = vmatprep.subr.mxu0 %v397
    %995 = vmatpush1.msra.mxu0 %v396
    %996 = vmatprep.subr.mxu0 %v403
    %997 = vmatpush1.msra.mxu0 %v402
    %998 = vmatprep.subr.mxu0 %v409
    %999 = vmatpush1.msra.mxu0 %v408
    %1000 = vmatprep.subr.mxu0 %v415
    %1001 = vmatpush1.msra.mxu0 %v414
    %1002 = vmatprep.subr.mxu0 %v421
    %1003 = vmatpush1.msra.mxu0 %v420
    %1004 = vmatprep.subr.mxu0 %v427
    %1005 = vmatpush1.msra.mxu0 %v426
    %1006 = vmatprep.subr.mxu0 %v433
    %1007 = vmatpush1.msra.mxu0 %v432
    %1008 = vmatprep.subr.mxu0 %v439
    %1009 = vmatpush1.msra.mxu0 %v438
    %1010 = vmatprep.subr.mxu0 %v445
    %1011 = vmatpush1.msra.mxu0 %v444
    %1012 = vmatprep.subr.mxu0 %v451
    %1013 = vmatpush1.msra.mxu0 %v450
    %1014 = vmatprep.subr.mxu0 %v457
    %1015 = vmatpush1.msra.mxu0 %v456
    %1016 = vmatprep.subr.mxu0 %v463
    %1017 = vmatpush1.msra.mxu0 %v462
    %1018 = vmatprep.subr.mxu0 %v469
    %1019 = vmatpush1.msra.mxu0 %v468
    %1020 = vmatprep.subr.mxu0 %v475
    %1021 = vmatpush1.msra.mxu0 %v474
    %1022 = vmatprep.subr.mxu0 %v481
    %1023 = vmatpush1.msra.mxu0 %v480
    %1024 = vmatprep.subr.mxu0 %v487
    %1025 = vmatpush1.msra.mxu0 %v486
    %1026 = vmatprep.subr.mxu0 %v493
    %1027 = vmatpush1.msra.mxu0 %v492
    %1028 = vmatprep.subr.mxu0 %v499
    %1029 = vmatpush1.msra.mxu0 %v498
    %1030 = vmatprep.subr.mxu0 %v505
    %1031 = vmatpush1.msra.mxu0 %v504
    %1032 = vmatprep.subr.mxu0 %v511
    %1033 = vmatpush1.msra.mxu0 %v510
    %1034 = vmatprep.subr.mxu0 %v517
    %1035 = vmatpush1.msra.mxu0 %v516
    %1036 = vmatprep.mubr.f32.mxu0 %v119
    %1037 = vmatmul.mubr.f32.gmra.mrb[0].mxu0 %v118
    %v1038 = vpop.f32.mrb[0].mxu0
    %v1039 = vadd.f32 %v950, %v1038
    %v1040 = vpop.f32.mrb[0].mxu0
    %v1041 = vadd.f32 %v952, %v1040
    %1042 = vmatprep.mubr.f32.mxu0 %v124
    %1043 = vmatmul.mubr.f32.gmra.mrb[0].mxu0 %v123
    %v1044 = vpop.f32.mrb[0].mxu0
    %v1045 = vadd.f32 %v956, %v1044
    %v1046 = vpop.f32.mrb[0].mxu0
    %v1047 = vadd.f32 %v958, %v1046
    %1048 = vmatprep.mubr.f32.mxu0 %v129
    %1049 = vmatmul.mubr.f32.gmra.mrb[0].mxu0 %v128
    %v1050 = vpop.f32.mrb[0].mxu0
    %v1051 = vadd.f32 %v962, %v1050
    %v1052 = vpop.f32.mrb[0].mxu0
    %v1053 = vadd.f32 %v964, %v1052
    %1054 = vmatprep.mubr.f32.mxu0 %v134
    %1055 = vmatmul.mubr.f32.gmra.mrb[0].mxu0 %v133
    %v1056 = vpop.f32.mrb[0].mxu0
    %v1057 = vadd.f32 %v968, %v1056
    %v1058 = vpop.f32.mrb[0].mxu0
    %v1059 = vadd.f32 %v970, %v1058
    %1060 = vdwg.mxu0
    %1061 = vmatprep.subr.mxu0 %v523
    %1062 = vmatpush1.msra.mxu0 %v522
    %1063 = vmatprep.subr.mxu0 %v529
    %1064 = vmatpush1.msra.mxu0 %v528
    %1065 = vmatprep.subr.mxu0 %v535
    %1066 = vmatpush1.msra.mxu0 %v534
    %1067 = vmatprep.subr.mxu0 %v541
    %1068 = vmatpush1.msra.mxu0 %v540
    %1069 = vmatprep.subr.mxu0 %v547
    %1070 = vmatpush1.msra.mxu0 %v546
    %1071 = vmatprep.subr.mxu0 %v553
    %1072 = vmatpush1.msra.mxu0 %v552
    %1073 = vmatprep.subr.mxu0 %v559
    %1074 = vmatpush1.msra.mxu0 %v558
    %1075 = vmatprep.subr.mxu0 %v565
    %1076 = vmatpush1.msra.mxu0 %v564
    %1077 = vmatprep.subr.mxu0 %v571
    %1078 = vmatpush1.msra.mxu0 %v570
    %1079 = vmatprep.subr.mxu0 %v577
    %1080 = vmatpush1.msra.mxu0 %v576
    %1081 = vmatprep.subr.mxu0 %v583
    %1082 = vmatpush1.msra.mxu0 %v582
    %1083 = vmatprep.subr.mxu0 %v589
    %1084 = vmatpush1.msra.mxu0 %v588
    %1085 = vmatprep.subr.mxu0 %v595
    %1086 = vmatpush1.msra.mxu0 %v594
    %1087 = vmatprep.subr.mxu0 %v601
    %1088 = vmatpush1.msra.mxu0 %v600
    %1089 = vmatprep.subr.mxu0 %v607
    %1090 = vmatpush1.msra.mxu0 %v606
    %1091 = vmatprep.subr.mxu0 %v613
    %1092 = vmatpush1.msra.mxu0 %v612
    %1093 = vmatprep.subr.mxu0 0.0
    %1094 = vmatpush1.msra.mxu0 0.0
    %1095 = vmatprep.subr.mxu0 0.0
    %1096 = vmatpush1.msra.mxu0 0.0
    %1097 = vmatprep.subr.mxu0 0.0
    %1098 = vmatpush1.msra.mxu0 0.0
    %1099 = vmatprep.subr.mxu0 0.0
    %1100 = vmatpush1.msra.mxu0 0.0
    %1101 = vmatprep.subr.mxu0 0.0
    %1102 = vmatpush1.msra.mxu0 0.0
    %1103 = vmatprep.subr.mxu0 0.0
    %1104 = vmatpush1.msra.mxu0 0.0
    %1105 = vmatprep.subr.mxu0 0.0
    %1106 = vmatpush1.msra.mxu0 0.0
    %1107 = vmatprep.subr.mxu0 0.0
    %1108 = vmatpush1.msra.mxu0 0.0
    %1109 = vmatprep.subr.mxu0 0.0
    %1110 = vmatpush1.msra.mxu0 0.0
    %1111 = vmatprep.subr.mxu0 0.0
    %1112 = vmatpush1.msra.mxu0 0.0
    %1113 = vmatprep.subr.mxu0 0.0
    %1114 = vmatpush1.msra.mxu0 0.0
    %1115 = vmatprep.subr.mxu0 0.0
    %1116 = vmatpush1.msra.mxu0 0.0
    %1117 = vmatprep.subr.mxu0 0.0
    %1118 = vmatpush1.msra.mxu0 0.0
    %1119 = vmatprep.subr.mxu0 0.0
    %1120 = vmatpush1.msra.mxu0 0.0
    %1121 = vmatprep.subr.mxu0 0.0
    %1122 = vmatpush1.msra.mxu0 0.0
    %1123 = vmatprep.subr.mxu0 0.0
    %1124 = vmatpush1.msra.mxu0 0.0
    %1125 = vmatprep.mubr.f32.mxu0 0.0
    %1126 = vmatmul.mubr.f32.gmra.mrb[0].mxu0 %v120
    %v1127 = vpop.f32.mrb[0].mxu0
    %v1128 = vadd.f32 %v1039, %v1127
    %v1129 = vpop.f32.mrb[0].mxu0
    %v1130 = vadd.f32 %v1041, %v1129
    %1131 = vmatprep.mubr.f32.mxu0 0.0
    %1132 = vmatmul.mubr.f32.gmra.mrb[0].mxu0 %v125
    %v1133 = vpop.f32.mrb[0].mxu0
    %v1134 = vadd.f32 %v1045, %v1133
    %v1135 = vpop.f32.mrb[0].mxu0
    %v1136 = vadd.f32 %v1047, %v1135
    %1137 = vmatprep.mubr.f32.mxu0 0.0
    %1138 = vmatmul.mubr.f32.gmra.mrb[0].mxu0 %v130
    %v1139 = vpop.f32.mrb[0].mxu0
    %v1140 = vadd.f32 %v1051, %v1139
    %v1141 = vpop.f32.mrb[0].mxu0
    %v1142 = vadd.f32 %v1053, %v1141
    %1143 = vmatprep.mubr.f32.mxu0 0.0
    %1144 = vmatmul.mubr.f32.gmra.mrb[0].mxu0 %v135
    %v1145 = vpop.f32.mrb[0].mxu0
    %v1146 = vadd.f32 %v1057, %v1145
    %v1147 = vpop.f32.mrb[0].mxu0
    %v1148 = vadd.f32 %v1059, %v1147
    %1149 = vdwg.mxu0
    %1150 = vmatprep.subr.mxu0 %v141
    %1151 = vmatpush1.msra.mxu0 %v140
    %1152 = vmatprep.subr.mxu0 %v147
    %1153 = vmatpush1.msra.mxu0 %v146
    %1154 = vmatprep.subr.mxu0 %v153
    %1155 = vmatpush1.msra.mxu0 %v152
    %1156 = vmatprep.subr.mxu0 %v159
    %1157 = vmatpush1.msra.mxu0 %v158
    %1158 = vmatprep.subr.mxu0 %v165
    %1159 = vmatpush1.msra.mxu0 %v164
    %1160 = vmatprep.subr.mxu0 %v171
    %1161 = vmatpush1.msra.mxu0 %v170
    %1162 = vmatprep.subr.mxu0 %v177
    %1163 = vmatpush1.msra.mxu0 %v176
    %1164 = vmatprep.subr.mxu0 %v183
    %1165 = vmatpush1.msra.mxu0 %v182
    %1166 = vmatprep.subr.mxu0 %v189
    %1167 = vmatpush1.msra.mxu0 %v188
    %1168 = vmatprep.subr.mxu0 %v195
    %1169 = vmatpush1.msra.mxu0 %v194
    %1170 = vmatprep.subr.mxu0 %v201
    %1171 = vmatpush1.msra.mxu0 %v200
    %1172 = vmatprep.subr.mxu0 %v207
    %1173 = vmatpush1.msra.mxu0 %v206
    %1174 = vmatprep.subr.mxu0 %v213
    %1175 = vmatpush1.msra.mxu0 %v212
    %1176 = vmatprep.subr.mxu0 %v219
    %1177 = vmatpush1.msra.mxu0 %v218
    %1178 = vmatprep.subr.mxu0 %v225
    %1179 = vmatpush1.msra.mxu0 %v224
    %1180 = vmatprep.subr.mxu0 %v231
    %1181 = vmatpush1.msra.mxu0 %v230
    %1182 = vmatprep.subr.mxu0 %v237
    %1183 = vmatpush1.msra.mxu0 %v236
    %1184 = vmatprep.subr.mxu0 %v243
    %1185 = vmatpush1.msra.mxu0 %v242
    %1186 = vmatprep.subr.mxu0 %v249
    %1187 = vmatpush1.msra.mxu0 %v248
    %1188 = vmatprep.subr.mxu0 %v255
    %1189 = vmatpush1.msra.mxu0 %v254
    %1190 = vmatprep.subr.mxu0 %v261
    %1191 = vmatpush1.msra.mxu0 %v260
    %1192 = vmatprep.subr.mxu0 %v267
    %1193 = vmatpush1.msra.mxu0 %v266
    %1194 = vmatprep.subr.mxu0 %v273
    %1195 = vmatpush1.msra.mxu0 %v272
    %1196 = vmatprep.subr.mxu0 %v279
    %1197 = vmatpush1.msra.mxu0 %v278
    %1198 = vmatprep.subr.mxu0 %v285
    %1199 = vmatpush1.msra.mxu0 %v284
    %1200 = vmatprep.subr.mxu0 %v291
    %1201 = vmatpush1.msra.mxu0 %v290
    %1202 = vmatprep.subr.mxu0 %v297
    %1203 = vmatpush1.msra.mxu0 %v296
    %1204 = vmatprep.subr.mxu0 %v303
    %1205 = vmatpush1.msra.mxu0 %v302
    %1206 = vmatprep.subr.mxu0 %v309
    %1207 = vmatpush1.msra.mxu0 %v308
    %1208 = vmatprep.subr.mxu0 %v315
    %1209 = vmatpush1.msra.mxu0 %v314
    %1210 = vmatprep.subr.mxu0 %v321
    %1211 = vmatpush1.msra.mxu0 %v320
    %1212 = vmatprep.subr.mxu0 %v327
    %1213 = vmatpush1.msra.mxu0 %v326
    %1214 = vmatprep.mubr.f32.mxu0 %v117
    %1215 = vmatmul.mubr.f32.gmra.mrb[0].mxu0 %v116
    %v1216 = vpop.f32.mrb[0].mxu0
    %v1217 = vadd.f32 0.0, %v1216
    %v1218 = vpop.f32.mrb[0].mxu0
    %v1219 = vadd.f32 0.0, %v1218
    %1220 = vmatprep.mubr.f32.mxu0 %v122
    %1221 = vmatmul.mubr.f32.gmra.mrb[0].mxu0 %v121
    %v1222 = vpop.f32.mrb[0].mxu0
    %v1223 = vadd.f32 0.0, %v1222
    %v1224 = vpop.f32.mrb[0].mxu0
    %v1225 = vadd.f32 0.0, %v1224
    %1226 = vmatprep.mubr.f32.mxu0 %v127
    %1227 = vmatmul.mubr.f32.gmra.mrb[0].mxu0 %v126
    %v1228 = vpop.f32.mrb[0].mxu0
    %v1229 = vadd.f32 0.0, %v1228
    %v1230 = vpop.f32.mrb[0].mxu0
    %v1231 = vadd.f32 0.0, %v1230
    %1232 = vmatprep.mubr.f32.mxu0 %v132
    %1233 = vmatmul.mubr.f32.gmra.mrb[0].mxu0 %v131
    %v1234 = vpop.f32.mrb[0].mxu0
    %v1235 = vadd.f32 0.0, %v1234
    %v1236 = vpop.f32.mrb[0].mxu0
    %v1237 = vadd.f32 0.0, %v1236
    %1238 = vdwg.mxu0
    %1239 = vmatprep.subr.mxu0 %v333
    %1240 = vmatpush1.msra.mxu0 %v332
    %1241 = vmatprep.subr.mxu0 %v339
    %1242 = vmatpush1.msra.mxu0 %v338
    %1243 = vmatprep.subr.mxu0 %v345
    %1244 = vmatpush1.msra.mxu0 %v344
    %1245 = vmatprep.subr.mxu0 %v351
    %1246 = vmatpush1.msra.mxu0 %v350
    %1247 = vmatprep.subr.mxu0 %v357
    %1248 = vmatpush1.msra.mxu0 %v356
    %1249 = vmatprep.subr.mxu0 %v363
    %1250 = vmatpush1.msra.mxu0 %v362
    %1251 = vmatprep.subr.mxu0 %v369
    %1252 = vmatpush1.msra.mxu0 %v368
    %1253 = vmatprep.subr.mxu0 %v375
    %1254 = vmatpush1.msra.mxu0 %v374
    %1255 = vmatprep.subr.mxu0 %v381
    %1256 = vmatpush1.msra.mxu0 %v380
    %1257 = vmatprep.subr.mxu0 %v387
    %1258 = vmatpush1.msra.mxu0 %v386
    %1259 = vmatprep.subr.mxu0 %v393
    %1260 = vmatpush1.msra.mxu0 %v392
    %1261 = vmatprep.subr.mxu0 %v399
    %1262 = vmatpush1.msra.mxu0 %v398
    %1263 = vmatprep.subr.mxu0 %v405
    %1264 = vmatpush1.msra.mxu0 %v404
    %1265 = vmatprep.subr.mxu0 %v411
    %1266 = vmatpush1.msra.mxu0 %v410
    %1267 = vmatprep.subr.mxu0 %v417
    %1268 = vmatpush1.msra.mxu0 %v416
    %1269 = vmatprep.subr.mxu0 %v423
    %1270 = vmatpush1.msra.mxu0 %v422
    %1271 = vmatprep.subr.mxu0 %v429
    %1272 = vmatpush1.msra.mxu0 %v428
    %1273 = vmatprep.subr.mxu0 %v435
    %1274 = vmatpush1.msra.mxu0 %v434
    %1275 = vmatprep.subr.mxu0 %v441
    %1276 = vmatpush1.msra.mxu0 %v440
    %1277 = vmatprep.subr.mxu0 %v447
    %1278 = vmatpush1.msra.mxu0 %v446
    %1279 = vmatprep.subr.mxu0 %v453
    %1280 = vmatpush1.msra.mxu0 %v452
    %1281 = vmatprep.subr.mxu0 %v459
    %1282 = vmatpush1.msra.mxu0 %v458
    %1283 = vmatprep.subr.mxu0 %v465
    %1284 = vmatpush1.msra.mxu0 %v464
    %1285 = vmatprep.subr.mxu0 %v471
    %1286 = vmatpush1.msra.mxu0 %v470
    %1287 = vmatprep.subr.mxu0 %v477
    %1288 = vmatpush1.msra.mxu0 %v476
    %1289 = vmatprep.subr.mxu0 %v483
    %1290 = vmatpush1.msra.mxu0 %v482
    %1291 = vmatprep.subr.mxu0 %v489
    %1292 = vmatpush1.msra.mxu0 %v488
    %1293 = vmatprep.subr.mxu0 %v495
    %1294 = vmatpush1.msra.mxu0 %v494
    %1295 = vmatprep.subr.mxu0 %v501
    %1296 = vmatpush1.msra.mxu0 %v500
    %1297 = vmatprep.subr.mxu0 %v507
    %1298 = vmatpush1.msra.mxu0 %v506
    %1299 = vmatprep.subr.mxu0 %v513
    %1300 = vmatpush1.msra.mxu0 %v512
    %1301 = vmatprep.subr.mxu0 %v519
    %1302 = vmatpush1.msra.mxu0 %v518
    %1303 = vmatprep.mubr.f32.mxu0 %v119
    %1304 = vmatmul.mubr.f32.gmra.mrb[0].mxu0 %v118
    %v1305 = vpop.f32.mrb[0].mxu0
    %v1306 = vadd.f32 %v1217, %v1305
    %v1307 = vpop.f32.mrb[0].mxu0
    %v1308 = vadd.f32 %v1219, %v1307
    %1309 = vmatprep.mubr.f32.mxu0 %v124
    %1310 = vmatmul.mubr.f32.gmra.mrb[0].mxu0 %v123
    %v1311 = vpop.f32.mrb[0].mxu0
    %v1312 = vadd.f32 %v1223, %v1311
    %v1313 = vpop.f32.mrb[0].mxu0
    %v1314 = vadd.f32 %v1225, %v1313
    %1315 = vmatprep.mubr.f32.mxu0 %v129
    %1316 = vmatmul.mubr.f32.gmra.mrb[0].mxu0 %v128
    %v1317 = vpop.f32.mrb[0].mxu0
    %v1318 = vadd.f32 %v1229, %v1317
    %v1319 = vpop.f32.mrb[0].mxu0
    %v1320 = vadd.f32 %v1231, %v1319
    %1321 = vmatprep.mubr.f32.mxu0 %v134
    %1322 = vmatmul.mubr.f32.gmra.mrb[0].mxu0 %v133
    %v1323 = vpop.f32.mrb[0].mxu0
    %v1324 = vadd.f32 %v1235, %v1323
    %v1325 = vpop.f32.mrb[0].mxu0
    %v1326 = vadd.f32 %v1237, %v1325
    %1327 = vdwg.mxu0
    %1328 = vmatprep.subr.mxu0 %v525
    %1329 = vmatpush1.msra.mxu0 %v524
    %1330 = vmatprep.subr.mxu0 %v531
    %1331 = vmatpush1.msra.mxu0 %v530
    %1332 = vmatprep.subr.mxu0 %v537
    %1333 = vmatpush1.msra.mxu0 %v536
    %1334 = vmatprep.subr.mxu0 %v543
    %1335 = vmatpush1.msra.mxu0 %v542
    %1336 = vmatprep.subr.mxu0 %v549
    %1337 = vmatpush1.msra.mxu0 %v548
    %1338 = vmatprep.subr.mxu0 %v555
    %1339 = vmatpush1.msra.mxu0 %v554
    %1340 = vmatprep.subr.mxu0 %v561
    %1341 = vmatpush1.msra.mxu0 %v560
    %1342 = vmatprep.subr.mxu0 %v567
    %1343 = vmatpush1.msra.mxu0 %v566
    %1344 = vmatprep.subr.mxu0 %v573
    %1345 = vmatpush1.msra.mxu0 %v572
    %1346 = vmatprep.subr.mxu0 %v579
    %1347 = vmatpush1.msra.mxu0 %v578
    %1348 = vmatprep.subr.mxu0 %v585
    %1349 = vmatpush1.msra.mxu0 %v584
    %1350 = vmatprep.subr.mxu0 %v591
    %1351 = vmatpush1.msra.mxu0 %v590
    %1352 = vmatprep.subr.mxu0 %v597
    %1353 = vmatpush1.msra.mxu0 %v596
    %1354 = vmatprep.subr.mxu0 %v603
    %1355 = vmatpush1.msra.mxu0 %v602
    %1356 = vmatprep.subr.mxu0 %v609
    %1357 = vmatpush1.msra.mxu0 %v608
    %1358 = vmatprep.subr.mxu0 %v615
    %1359 = vmatpush1.msra.mxu0 %v614
    %1360 = vmatprep.subr.mxu0 0.0
    %1361 = vmatpush1.msra.mxu0 0.0
    %1362 = vmatprep.subr.mxu0 0.0
    %1363 = vmatpush1.msra.mxu0 0.0
    %1364 = vmatprep.subr.mxu0 0.0
    %1365 = vmatpush1.msra.mxu0 0.0
    %1366 = vmatprep.subr.mxu0 0.0
    %1367 = vmatpush1.msra.mxu0 0.0
    %1368 = vmatprep.subr.mxu0 0.0
    %1369 = vmatpush1.msra.mxu0 0.0
    %1370 = vmatprep.subr.mxu0 0.0
    %1371 = vmatpush1.msra.mxu0 0.0
    %1372 = vmatprep.subr.mxu0 0.0
    %1373 = vmatpush1.msra.mxu0 0.0
    %1374 = vmatprep.subr.mxu0 0.0
    %1375 = vmatpush1.msra.mxu0 0.0
    %1376 = vmatprep.subr.mxu0 0.0
    %1377 = vmatpush1.msra.mxu0 0.0
    %1378 = vmatprep.subr.mxu0 0.0
    %1379 = vmatpush1.msra.mxu0 0.0
    %1380 = vmatprep.subr.mxu0 0.0
    %1381 = vmatpush1.msra.mxu0 0.0
    %1382 = vmatprep.subr.mxu0 0.0
    %1383 = vmatpush1.msra.mxu0 0.0
    %1384 = vmatprep.subr.mxu0 0.0
    %1385 = vmatpush1.msra.mxu0 0.0
    %1386 = vmatprep.subr.mxu0 0.0
    %1387 = vmatpush1.msra.mxu0 0.0
    %1388 = vmatprep.subr.mxu0 0.0
    %1389 = vmatpush1.msra.mxu0 0.0
    %1390 = vmatprep.subr.mxu0 0.0
    %1391 = vmatpush1.msra.mxu0 0.0
    %1392 = vmatprep.mubr.f32.mxu0 0.0
    %1393 = vmatmul.mubr.f32.gmra.mrb[0].mxu0 %v120
    %v1394 = vpop.f32.mrb[0].mxu0
    %v1395 = vadd.f32 %v1306, %v1394
    %v1396 = vpop.f32.mrb[0].mxu0
    %v1397 = vadd.f32 %v1308, %v1396
    %1398 = vmatprep.mubr.f32.mxu0 0.0
    %1399 = vmatmul.mubr.f32.gmra.mrb[0].mxu0 %v125
    %v1400 = vpop.f32.mrb[0].mxu0
    %v1401 = vadd.f32 %v1312, %v1400
    %v1402 = vpop.f32.mrb[0].mxu0
    %v1403 = vadd.f32 %v1314, %v1402
    %1404 = vmatprep.mubr.f32.mxu0 0.0
    %1405 = vmatmul.mubr.f32.gmra.mrb[0].mxu0 %v130
    %v1406 = vpop.f32.mrb[0].mxu0
    %v1407 = vadd.f32 %v1318, %v1406
    %v1408 = vpop.f32.mrb[0].mxu0
    %v1409 = vadd.f32 %v1320, %v1408
    %1410 = vmatprep.mubr.f32.mxu0 0.0
    %1411 = vmatmul.mubr.f32.gmra.mrb[0].mxu0 %v135
    %v1412 = vpop.f32.mrb[0].mxu0
    %v1413 = vadd.f32 %v1324, %v1412
    %v1414 = vpop.f32.mrb[0].mxu0
    %v1415 = vadd.f32 %v1326, %v1414
    %1416 = vdwg.mxu0
    %v1417 = vmul.f32 %v861, %v861
    %v1418 = vmul.f32 %v863, %v863
    %v1419 = vmul.f32 %v1128, %v1128
    %v1420 = vmul.f32 %v867, %v867
    %v1421 = vmul.f32 %v869, %v869
    %v1422 = vmul.f32 %v1134, %v1134
    %v1423 = vmul.f32 %v873, %v873
    %v1424 = vmul.f32 %v875, %v875
    %v1425 = vmul.f32 %v1140, %v1140
    %v1426 = vmul.f32 %v879, %v879
    %v1427 = vmul.f32 %v881, %v881
    %v1428 = vmul.f32 %v1146, %v1146
    %v1429 = vmul.f32 %v1130, %v1130
    %v1430 = vmul.f32 %v1395, %v1395
    %v1431 = vmul.f32 %v1397, %v1397
    %v1432 = vmul.f32 %v1136, %v1136
    %v1433 = vmul.f32 %v1401, %v1401
    %v1434 = vmul.f32 %v1403, %v1403
    %v1435 = vmul.f32 %v1142, %v1142
    %v1436 = vmul.f32 %v1407, %v1407
    %v1437 = vmul.f32 %v1409, %v1409
    %v1438 = vmul.f32 %v1148, %v1148
    %v1439 = vmul.f32 %v1413, %v1413
    %v1440 = vmul.f32 %v1415, %v1415
    %v1441 = vadd.f32 %v1417, %v1429
    %v1442 = vadd.f32 %v1418, %v1430
    %v1443 = vadd.f32 %v1419, %v1431
    %v1444 = vadd.f32 %v1420, %v1432
    %v1445 = vadd.f32 %v1421, %v1433
    %v1446 = vadd.f32 %v1422, %v1434
    %v1447 = vadd.f32 %v1423, %v1435
    %v1448 = vadd.f32 %v1424, %v1436
    %v1449 = vadd.f32 %v1425, %v1437
    %v1450 = vadd.f32 %v1426, %v1438
    %v1451 = vadd.f32 %v1427, %v1439
    %v1452 = vadd.f32 %v1428, %v1440
    %v1453 = vld [vmem:[#allocation8] sm:$0x7]
    %v1455 = vlaneseq
    %v1456 = vshrl.u32 %v1455, 7
    %v1457 = vsub.s32 0, %v1456
    %v1458 = vrot.slane %v1453, %v1457
    %v1459 = vlaneseq
    %v1460 = vshrl.u32 %v1459, 7
    %v1461 = vsub.s32 1, %v1460
    %v1462 = vrot.slane %v1453, %v1461
    %v1463 = vlaneseq
    %v1464 = vshrl.u32 %v1463, 7
    %v1465 = vsub.s32 2, %v1464
    %v1466 = vrot.slane %v1453, %v1465
    %v1470 = vmul.f32 %v1441, %v1458
    %v1471 = vmul.f32 %v1442, %v1462
    %v1472 = vmul.f32 %v1443, %v1466
    %v1473 = vmul.f32 %v1444, %v1458
    %v1474 = vmul.f32 %v1445, %v1462
    %v1475 = vmul.f32 %v1446, %v1466
    %v1476 = vmul.f32 %v1447, %v1458
    %v1477 = vmul.f32 %v1448, %v1462
    %v1478 = vmul.f32 %v1449, %v1466
    %v1479 = vmul.f32 %v1450, %v1458
    %v1480 = vmul.f32 %v1451, %v1462
    %v1481 = vmul.f32 %v1452, %v1466
    %v1482 = vadd.f32 %v1470, 1e-10
    %v1483 = vadd.f32 %v1471, 1e-10
    %v1484 = vadd.f32 %v1472, 1e-10
    %v1485 = vadd.f32 %v1473, 1e-10
    %v1486 = vadd.f32 %v1474, 1e-10
    %v1487 = vadd.f32 %v1475, 1e-10
    %v1488 = vadd.f32 %v1476, 1e-10
    %v1489 = vadd.f32 %v1477, 1e-10
    %v1490 = vadd.f32 %v1478, 1e-10
    %v1491 = vadd.f32 %v1479, 1e-10
    %v1492 = vadd.f32 %v1480, 1e-10
    %v1493 = vadd.f32 %v1481, 1e-10
    %v1494 = vlog2.pop %v1482
    %v1495 = vmul.f32 %v1494, 0.6931472
    %v1496 = vlog2.pop %v1483
    %v1497 = vmul.f32 %v1496, 0.6931472
    %v1498 = vlog2.pop %v1484
    %v1499 = vmul.f32 %v1498, 0.6931472
    %v1500 = vlog2.pop %v1485
    %v1501 = vmul.f32 %v1500, 0.6931472
    %v1502 = vlog2.pop %v1486
    %v1503 = vmul.f32 %v1502, 0.6931472
    %v1504 = vlog2.pop %v1487
    %v1505 = vmul.f32 %v1504, 0.6931472
    %v1506 = vlog2.pop %v1488
    %v1507 = vmul.f32 %v1506, 0.6931472
    %v1508 = vlog2.pop %v1489
    %v1509 = vmul.f32 %v1508, 0.6931472
    %v1510 = vlog2.pop %v1490
    %v1511 = vmul.f32 %v1510, 0.6931472
    %v1512 = vlog2.pop %v1491
    %v1513 = vmul.f32 %v1512, 0.6931472
    %v1514 = vlog2.pop %v1492
    %v1515 = vmul.f32 %v1514, 0.6931472
    %v1516 = vlog2.pop %v1493
    %v1517 = vmul.f32 %v1516, 0.6931472
    %1518 = vst [vmem:[#allocation10] sm:$0xff] %v1495
    %1519 = vst [vmem:[#allocation10 + $0x8] sm:$0xff] %v1497
    %1520 = vst [vmem:[#allocation10 + $0x10] sm:$0xff] %v1499
    %1521 = vst [vmem:[#allocation10 + $0x18] sm:$0xff] %v1501
    %1522 = vst [vmem:[#allocation10 + $0x20] sm:$0xff] %v1503
    %1523 = vst [vmem:[#allocation10 + $0x28] sm:$0xff] %v1505
    %1524 = vst [vmem:[#allocation10 + $0x30] sm:$0xff] %v1507
    %1525 = vst [vmem:[#allocation10 + $0x38] sm:$0xff] %v1509
    %1526 = vst [vmem:[#allocation10 + $0x40] sm:$0xff] %v1511
    %1527 = vst [vmem:[#allocation10 + $0x48] sm:$0xff] %v1513
    %1528 = vst [vmem:[#allocation10 + $0x50] sm:$0xff] %v1515
    %1529 = vst [vmem:[#allocation10 + $0x58] sm:$0xff] %v1517
    // Predicated region
    $region34: #{tpu_custom_call.1} parent=1 // pred_check
      _
    $region35: #{tpu_custom_call.1} parent=1 // pred_check_branch
      %1531 = sbr.rel (0) target = $region37
    $region36: #{tpu_custom_call.1} parent=1 // pred_region
      %s1533 = ssub.s32 1536, 1536
      %1534 = vsyncadd [#allocation4], %s1533
      %s1535 = sshll.u32 [#allocation10], 4
      %s1536 = int_to_ptr.vmem [resolvable:$true] %s1535
      %1541 = dma.vmem_to_hbm [thread:$0]  %s1536, 1536, %s4, [#allocation4], 384, 384, 24
    $region37: #{tpu_custom_call.1} parent=1 // pred_fallthru
      _
    // Predicated region
    $region38: #{tpu_custom_call.1} parent=1 // pred_check
      _
    $region39: #{tpu_custom_call.1} parent=1 // pred_check_branch
      %1543 = sbr.rel (0) target = $region41
    $region40: #{tpu_custom_call.1} parent=1 // pred_region
      %1544 = dma.done [#allocation4], 1536
    $region41: #{tpu_custom_call.1} parent=1 // pred_fallthru
      _
    %1545 = vsyncpa [#allocation3], 1
    %1546 = vsyncpa [#allocation6], 1
    %1547 = vsyncpa [#allocation9], 1
    %1548 = vsyncpa [#allocation4], 1

</llo_original>
